<compile_context>
chip_gen: v7x
topology: tpu7x:2x2x1
jax: 0.10.0
libtpu: 0.0.40
codegen_flags: <defaults>
</compile_context>

<pallas_src>
import jax
import jax.numpy as jnp
from jax.experimental import pallas as pl
from jax.experimental.pallas import tpu as pltpu


# ----------------------------------------------------------------------------
# Fused VAE-core kernel: input projection + encoder LSTM + reparameterisation +
# latent2hidden + decoder LSTM, all in one pallas_call.
# ----------------------------------------------------------------------------
def _vae_core_kernel(x_ref, len_ref, w_in_ref, b_in_ref,
                     enc_whh_ref, dec_whh_ref, h0_ref, c0_ref, noise_ref,
                     h2mv_w_ref, h2mv_b_ref, l2h_w_ref, l2h_b_ref,
                     dec_out_ref, henc_ref, cenc_ref, mean_ref, logvar_ref,
                     z_ref, gx_sc, dec_sc):
    S, B, _ = x_ref.shape
    H = h0_ref.shape[-1]
    L = noise_ref.shape[-1]

    # Hoist every loop-invariant load once (weights live in vregs/VMEM).
    w_in = w_in_ref[...]            # (E, 8H)  [encoder W_ih | decoder W_ih]
    b_in = b_in_ref[...]            # (1, 8H)  combined biases
    enc_whh = enc_whh_ref[...]      # (H, 4H)
    dec_whh = dec_whh_ref[...]      # (H, 4H)
    lens = len_ref[...]             # (B, 1) int32

    # ---- hoisted input projection for both LSTMs (not on the recurrent chain)
    def proj_body(t, carry):
        gx_sc[t] = (jnp.dot(x_ref[t], w_in,
                            preferred_element_type=jnp.float32) + b_in)
        return carry

    jax.lax.fori_loop(0, S, proj_body, 0)

    # Full-vreg gate activation: sigmoid/tanh over the whole (B, 4H) tile, then
    # a static lane mask picks tanh for the "g" block (hoisted out of the loop).
    lane = jax.lax.broadcasted_iota(jnp.int32, (B, 4 * H), 1)
    is_g = jnp.logical_and(lane >= 2 * H, lane < 3 * H)

    def lstm_step(gx_t, whh, h, c, valid):
        gates = gx_t + jnp.dot(h, whh, preferred_element_type=jnp.float32)
        act = jnp.where(is_g, jnp.tanh(gates), jax.nn.sigmoid(gates))
        i_g = act[:, 0 * H:1 * H]
        f_g = act[:, 1 * H:2 * H]
        g_g = act[:, 2 * H:3 * H]
        o_g = act[:, 3 * H:4 * H]
        c_new = f_g * c + i_g * g_g
        h_new = o_g * jnp.tanh(c_new)
        # PackedSequence semantics: freeze state past each sequence's length.
        h_keep = jnp.where(valid, h_new, h)
        c_keep = jnp.where(valid, c_new, c)
        return h_new, h_keep, c_keep

    # ---- encoder recurrence: only the final (h, c) is needed ----------------
    def enc_body(t, carry):
        h, c = carry
        valid = t < lens
        _, h, c = lstm_step(gx_sc[t][:, 0:4 * H], enc_whh, h, c, valid)
        return (h, c)

    h_enc, c_enc = jax.lax.fori_loop(0, S, enc_body,
                                     (h0_ref[...], c0_ref[...]))
    henc_ref[...] = h_enc
    cenc_ref[...] = c_enc

    # ---- reparameterisation + latent2hidden (fused tiny matmuls) ------------
    mv = (jnp.dot(h_enc, h2mv_w_ref[...],
                  preferred_element_type=jnp.float32) + h2mv_b_ref[...])
    mean = mv[:, 0:L]
    log_var = mv[:, L:2 * L]
    z = noise_ref[...] * jnp.exp(0.5 * log_var) + mean
    hd = (jnp.dot(z, l2h_w_ref[...],
                  preferred_element_type=jnp.float32) + l2h_b_ref[...])
    mean_ref[...] = mean
    logvar_ref[...] = log_var
    z_ref[...] = z

    # ---- decoder recurrence; outputs are zero at padded timesteps -----------
    def dec_body(t, carry):
        h, c = carry
        valid = t < lens
        h_new, h, c = lstm_step(gx_sc[t][:, 4 * H:8 * H], dec_whh, h, c, valid)
        dec_sc[t] = jnp.where(valid, h_new, 0.0)
        return (h, c)

    jax.lax.fori_loop(0, S, dec_body, (hd, hd))

    # Time-major scratch -> batch-first output (static unrolled relayout; keeps
    # all host-side activation transposes out of the graph).  B is small here.
    for b in range(B):
        dec_out_ref[b] = dec_sc[:, b, :]


def vae_core(x_tm, lens, w_in_cat, b_in_cat, enc_whh, dec_whh, h0, c0, noise,
             h2mv_w, h2mv_b, l2h_w, l2h_b):
    """x_tm: (S,B,E) time-major embeddings. Returns decoder output (B,S,H),
    encoder final (h, c), mean, log_var, z."""
    S, B, E = x_tm.shape
    H = h0.shape[-1]
    L = noise.shape[-1]

    def full(shape):
        return pl.BlockSpec(shape, lambda i, _s=len(shape): (0,) * _s)

    grid_spec = pltpu.PrefetchScalarGridSpec(
        num_scalar_prefetch=0,
        grid=(1,),
        in_specs=[
            full((S, B, E)), full((B, 1)), full((E, 8 * H)), full((1, 8 * H)),
            full((H, 4 * H)), full((H, 4 * H)), full((B, H)), full((B, H)),
            full((B, L)), full((H, 2 * L)), full((1, 2 * L)), full((L, H)),
            full((1, H)),
        ],
        out_specs=[
            full((B, S, H)), full((B, H)), full((B, H)),
            full((B, L)), full((B, L)), full((B, L)),
        ],
        scratch_shapes=[
            pltpu.VMEM((S, B, 8 * H), jnp.float32),   # hoisted gate pre-acts
            pltpu.VMEM((S, B, H), jnp.float32),       # time-major decoder out
        ],
    )
    return pl.pallas_call(
        _vae_core_kernel,
        out_shape=(
            jax.ShapeDtypeStruct((B, S, H), jnp.float32),
            jax.ShapeDtypeStruct((B, H), jnp.float32),
            jax.ShapeDtypeStruct((B, H), jnp.float32),
            jax.ShapeDtypeStruct((B, L), jnp.float32),
            jax.ShapeDtypeStruct((B, L), jnp.float32),
            jax.ShapeDtypeStruct((B, L), jnp.float32),
        ),
        grid_spec=grid_spec,
        compiler_params=pltpu.CompilerParams(
            dimension_semantics=("arbitrary",)),
    )(x_tm, lens, w_in_cat, b_in_cat, enc_whh, dec_whh, h0, c0, noise,
      h2mv_w, h2mv_b, l2h_w, l2h_b)


# ----------------------------------------------------------------------------
# Output projection + LogSoftmax, row-tiled (parallel grid -> v7x 2nd core).
# ----------------------------------------------------------------------------
def _output_logsoftmax_kernel(x_ref, w_ref, b_ref, o_ref):
    logits = (jnp.dot(x_ref[...], w_ref[...],
                      preferred_element_type=jnp.float32) + b_ref[...])
    m = jnp.max(logits, axis=-1, keepdims=True)
    shifted = logits - m
    lse = jnp.log(jnp.sum(jnp.exp(shifted), axis=-1, keepdims=True))
    o_ref[...] = (shifted - lse).astype(o_ref.dtype)


def output_logsoftmax(x, w_T, b, row_tile=512):
    """x: (M, H), w_T: (H, V), b: (1, V) -> log_softmax(x @ w_T + b), (M, V)."""
    M, H = x.shape
    V = w_T.shape[1]
    tm = M if M <= row_tile else row_tile
    grid_spec = pltpu.PrefetchScalarGridSpec(
        num_scalar_prefetch=0,
        grid=(pl.cdiv(M, tm),),
        in_specs=[pl.BlockSpec((tm, H), lambda i: (i, 0)),
                  pl.BlockSpec((H, V), lambda i: (0, 0)),
                  pl.BlockSpec((1, V), lambda i: (0, 0))],
        out_specs=pl.BlockSpec((tm, V), lambda i: (i, 0)),
    )
    return pl.pallas_call(
        _output_logsoftmax_kernel,
        out_shape=jax.ShapeDtypeStruct((M, V), jnp.float32),
        grid_spec=grid_spec,
        compiler_params=pltpu.CompilerParams(
            dimension_semantics=("parallel",)),
    )(x, w_T, b)


# ----------------------------------------------------------------------------
# Parameter construction (deterministic, synthetic).
# Weights are stored pre-transposed and pre-fused for the kernels:
#   w_ih_cat_T : (E, 8H)  columns [0:4H]=encoder i,f,g,o  [4H:8H]=decoder i,f,g,o
#   h2mv_w_T   : (H, 2L)  columns [0:L]=hidden2mean       [L:2L]=hidden2logv
# ----------------------------------------------------------------------------
def init_params(key, vocab_size, embedding_size, hidden_size, latent_size):
    ks = jax.random.split(key, 9)
    u = lambda k, shape, scale: jax.random.uniform(k, shape, jnp.float32,
                                                   -scale, scale)
    V, E, H, L = vocab_size, embedding_size, hidden_size, latent_size
    s_h = 1.0 / (H ** 0.5)
    return {
        "embedding": jax.random.normal(ks[0], (V, E), jnp.float32),
        "w_ih_cat_T": u(ks[1], (E, 8 * H), s_h),
        "b_ih_cat": u(ks[2], (1, 8 * H), s_h),       # stands in for b_ih + b_hh
        "enc_w_hh_T": u(ks[3], (H, 4 * H), s_h),
        "dec_w_hh_T": u(ks[4], (H, 4 * H), s_h),
        "h2mv_w_T": u(ks[5], (H, 2 * L), s_h),
        "h2mv_b": jnp.zeros((1, 2 * L), jnp.float32),
        "l2h_w_T": u(ks[6], (L, H), 1.0 / (L ** 0.5)),
        "l2h_b": jnp.zeros((1, H), jnp.float32),
        "out_w_T": u(ks[7], (H, V), s_h),
        "out_b": u(ks[8], (1, V), s_h),
    }


# ----------------------------------------------------------------------------
# T_VAE forward (glue in JAX, hot paths in Pallas)
# ----------------------------------------------------------------------------
@jax.jit
def t_vae_forward(params, x_tokens, sentences_length, hidden_encoder, noise):
    """Mirrors T_VAE.forward(x, sentences_length, hidden_encoder)."""
    B, S = x_tokens.shape
    H = params["enc_w_hh_T"].shape[0]
    V = params["out_w_T"].shape[1]

    # Embedding lookup written directly time-major: transpose the tiny int32
    # token matrix (free) rather than transposing the (B,S,E) activations.
    x_tm = jnp.take(params["embedding"], x_tokens.T, axis=0)       # (S, B, E)
    lens = sentences_length.astype(jnp.int32).reshape(B, 1)

    # TODO(synk): embedding dropout omitted (module run with p = 0.0 -> identity).
    h0, c0 = hidden_encoder                                        # (1, B, H)

    dec_out, h_enc, c_enc, mean, log_var, z = vae_core(
        x_tm, lens,
        params["w_ih_cat_T"], params["b_ih_cat"],
        params["enc_w_hh_T"], params["dec_w_hh_T"],
        h0[0], c0[0], noise,
        params["h2mv_w_T"], params["h2mv_b"],
        params["l2h_w_T"], params["l2h_b"])

    # Vocab projection + LogSoftmax (row-tiled Pallas kernel).
    x_hat = output_logsoftmax(dec_out.reshape(B * S, H),
                              params["out_w_T"], params["out_b"])
    x_hat = x_hat.reshape(B, S, V)

    hidden_enc = (h_enc[None], c_enc[None])
    # match PyTorch shapes: mean/log_var/z are (num_layers=1, B, latent)
    return x_hat, mean[None], log_var[None], z[None], hidden_enc


# ----------------------------------------------------------------------------
# Pure-JAX reference of the same forward pass (for numerics checking only).
# ----------------------------------------------------------------------------
def reference_forward(params, x_tokens, sentences_length, hidden_encoder, noise):
    H = params["enc_w_hh_T"].shape[0]
    L = noise.shape[-1]
    x_embed = jnp.take(params["embedding"], x_tokens, axis=0)      # (B, S, E)
    B, S, _ = x_embed.shape
    w_in, b_in = params["w_ih_cat_T"], params["b_ih_cat"]
    mask = (jnp.arange(S)[None, :] < sentences_length[:, None])    # (B, S)

    def run_lstm(wih, whh, b, h0, c0):
        def step(carry, inp):
            h, c = carry
            x_t, m_t = inp
            g = x_t @ wih + h @ whh + b
            i = jax.nn.sigmoid(g[:, 0 * H:1 * H])
            f = jax.nn.sigmoid(g[:, 1 * H:2 * H])
            gg = jnp.tanh(g[:, 2 * H:3 * H])
            o = jax.nn.sigmoid(g[:, 3 * H:4 * H])
            c_new = f * c + i * gg
            h_new = o * jnp.tanh(c_new)
            m = m_t[:, None]
            return ((jnp.where(m, h_new, h), jnp.where(m, c_new, c)),
                    jnp.where(m, h_new, 0.0))
        (h_n, c_n), outs = jax.lax.scan(
            step, (h0, c0),
            (jnp.swapaxes(x_embed, 0, 1), jnp.swapaxes(mask, 0, 1)))
        return jnp.swapaxes(outs, 0, 1), h_n, c_n

    h0, c0 = hidden_encoder
    _, h_enc, c_enc = run_lstm(w_in[:, :4 * H], params["enc_w_hh_T"],
                               b_in[:, :4 * H], h0[0], c0[0])
    mv = h_enc @ params["h2mv_w_T"] + params["h2mv_b"]
    mean, log_var = mv[:, :L], mv[:, L:]
    z = noise * jnp.exp(0.5 * log_var) + mean
    hd = z @ params["l2h_w_T"] + params["l2h_b"]
    dec_out, _, _ = run_lstm(w_in[:, 4 * H:], params["dec_w_hh_T"],
                             b_in[:, 4 * H:], hd, hd)
    logits = dec_out.reshape(B * S, H) @ params["out_w_T"] + params["out_b"]
    x_hat = jax.nn.log_softmax(logits, axis=-1).reshape(B, S, -1)
    return x_hat, mean, log_var, z, h_enc, c_enc


# ----------------------------------------------------------------------------
if __name__ == "__main__":
    VOCAB, EMBED, HIDDEN, LATENT = 50, 16, 32, 8
    BATCH, SEQ = 2, 8

    root = jax.random.PRNGKey(0)
    k_param, k_tok, k_noise = jax.random.split(root, 3)

    params = init_params(k_param, VOCAB, EMBED, HIDDEN, LATENT)

    x_tokens = jax.random.randint(k_tok, (BATCH, SEQ), 0, VOCAB, jnp.int32)
    sentences_length = jnp.array([SEQ, 5], jnp.int32)
    noise = jax.random.normal(k_noise, (BATCH, LATENT), jnp.float32)
    hidden_encoder = (jnp.zeros((1, BATCH, HIDDEN), jnp.float32),
                      jnp.zeros((1, BATCH, HIDDEN), jnp.float32))

    outs = jax.block_until_ready(
        t_vae_forward(params, x_tokens, sentences_length, hidden_encoder,
                      noise))
    x_hat, mean, log_var, z, hidden_enc = outs

    assert x_hat.shape == (BATCH, SEQ, VOCAB)
    assert mean.shape == (1, BATCH, LATENT)
    assert log_var.shape == (1, BATCH, LATENT)
    assert z.shape == (1, BATCH, LATENT)
    assert hidden_enc[0].shape == (1, BATCH, HIDDEN)
    # log_softmax rows must sum to ~1 in prob space
    assert bool(jnp.allclose(jnp.exp(x_hat).sum(-1), 1.0, atol=1e-4))

    # numerics vs a pure-JAX reference of the same forward pass
    r_xhat, r_mean, r_logv, r_z, r_h, r_c = reference_forward(
        params, x_tokens, sentences_length, hidden_encoder, noise)
    checks = ((x_hat, r_xhat), (mean[0], r_mean), (log_var[0], r_logv),
              (z[0], r_z), (hidden_enc[0][0], r_h), (hidden_enc[1][0], r_c))
    for got, want in checks:
        assert bool(jnp.allclose(got, want, rtol=2e-2, atol=2e-2)), \
            "Pallas output does not match JAX reference"

    print("KERNEL_OK")
</pallas_src>

<mosaic_0001>
module attributes {stable_mosaic.version = 11 : i64} {
  func.func @_output_logsoftmax_kernel(%arg0: i32, %arg1: memref<16x32xf32, #tpu.memory_space<vmem>>, %arg2: memref<32x50xf32, #tpu.memory_space<vmem>>, %arg3: memref<1x50xf32, #tpu.memory_space<vmem>>, %arg4: memref<16x50xf32, #tpu.memory_space<vmem>>) attributes {dimension_semantics = [#tpu.dimension_semantics<parallel>], iteration_bounds = array<i64: 1>, scalar_prefetch = 0 : i64, scratch_operands = 0 : i64, tpu.core_type = #tpu.core_type<tc>, window_params = [{transform_indices = @transform_0, window_bounds = array<i64: 16, 32>}, {pipeline_mode = #tpu.pipeline_mode<synchronous>, transform_indices = @transform_1, window_bounds = array<i64: 32, 50>}, {pipeline_mode = #tpu.pipeline_mode<synchronous>, transform_indices = @transform_2, window_bounds = array<i64: 1, 50>}, {transform_indices = @transform_3, window_bounds = array<i64: 16, 50>}]} {
    %c0 = arith.constant 0 : index
    %c0_0 = arith.constant 0 : index
    %0 = vector.load %arg1[%c0, %c0_0] : memref<16x32xf32, #tpu.memory_space<vmem>>, vector<16x32xf32>
    %c0_1 = arith.constant 0 : index
    %c0_2 = arith.constant 0 : index
    %1 = vector.load %arg2[%c0_1, %c0_2] : memref<32x50xf32, #tpu.memory_space<vmem>>, vector<32x50xf32>
    %cst = arith.constant dense<0.000000e+00> : vector<16x50xf32>
    %2 = tpu.matmul %0, %1, %cst {dimension_numbers = #tpu.dot_dimension_numbers<[1], [0], [0], [1], [0, 0, 1, 1], [], []>} : vector<16x32xf32>, vector<32x50xf32>, vector<16x50xf32> -> vector<16x50xf32>
    %c0_3 = arith.constant 0 : index
    %c0_4 = arith.constant 0 : index
    %3 = vector.load %arg3[%c0_3, %c0_4] : memref<1x50xf32, #tpu.memory_space<vmem>>, vector<1x50xf32>
    %4 = vector.broadcast %3 : vector<1x50xf32> to vector<16x50xf32>
    %5 = arith.addf %2, %4 : vector<16x50xf32>
    %cst_5 = arith.constant dense<0xFF800000> : vector<16xf32>
    %6 = vector.multi_reduction <maximumf>, %5, %cst_5 [1] : vector<16x50xf32> to vector<16xf32>
    %7 = vector.shape_cast %6 : vector<16xf32> to vector<16x1xf32>
    %8 = vector.broadcast %7 : vector<16x1xf32> to vector<16x50xf32>
    %9 = arith.subf %5, %8 : vector<16x50xf32>
    %10 = math.exp %9 : vector<16x50xf32>
    %cst_6 = arith.constant dense<0.000000e+00> : vector<16xf32>
    %11 = vector.multi_reduction <add>, %10, %cst_6 [1] : vector<16x50xf32> to vector<16xf32>
    %12 = vector.shape_cast %11 : vector<16xf32> to vector<16x1xf32>
    %13 = math.log %12 : vector<16x1xf32>
    %14 = vector.broadcast %13 : vector<16x1xf32> to vector<16x50xf32>
    %15 = arith.subf %9, %14 : vector<16x50xf32>
    %c0_7 = arith.constant 0 : index
    %c0_8 = arith.constant 0 : index
    %16 = vector.load %arg4[%c0_7, %c0_8] : memref<16x50xf32, #tpu.memory_space<vmem>>, vector<16x50xf32>
    tpu.vector_store %arg4[%c0_7, %c0_8], %15 {strides = array<i32>} : memref<16x50xf32, #tpu.memory_space<vmem>>, vector<16x50xf32>,
    return
  }
  func.func @transform_0(%arg0: i32) -> (i32, i32) {
    %c0_i32 = arith.constant 0 : i32
    %c0_i32_0 = arith.constant 0 : i32
    return %arg0, %c0_i32 : i32, i32
  }
  func.func @transform_1(%arg0: i32) -> (i32, i32) {
    %c0_i32 = arith.constant 0 : i32
    %c0_i32_0 = arith.constant 0 : i32
    %c0_i32_1 = arith.constant 0 : i32
    return %c0_i32, %c0_i32_0 : i32, i32
  }
  func.func @transform_2(%arg0: i32) -> (i32, i32) {
    %c0_i32 = arith.constant 0 : i32
    %c0_i32_0 = arith.constant 0 : i32
    %c0_i32_1 = arith.constant 0 : i32
    return %c0_i32, %c0_i32_0 : i32, i32
  }
  func.func @transform_3(%arg0: i32) -> (i32, i32) {
    %c0_i32 = arith.constant 0 : i32
    %c0_i32_0 = arith.constant 0 : i32
    return %arg0, %c0_i32 : i32, i32
  }
}

module attributes {stable_mosaic.version = 11 : i64} {
  func.func @_vae_core_kernel(%arg0: i32, %arg1: memref<8x2x16xf32, #tpu.memory_space<vmem>>, %arg2: memref<2x1xi32, #tpu.memory_space<vmem>>, %arg3: memref<16x256xf32, #tpu.memory_space<vmem>>, %arg4: memref<1x256xf32, #tpu.memory_space<vmem>>, %arg5: memref<32x128xf32, #tpu.memory_space<vmem>>, %arg6: memref<32x128xf32, #tpu.memory_space<vmem>>, %arg7: memref<2x32xf32, #tpu.memory_space<vmem>>, %arg8: memref<2x32xf32, #tpu.memory_space<vmem>>, %arg9: memref<2x8xf32, #tpu.memory_space<vmem>>, %arg10: memref<32x16xf32, #tpu.memory_space<vmem>>, %arg11: memref<1x16xf32, #tpu.memory_space<vmem>>, %arg12: memref<8x32xf32, #tpu.memory_space<vmem>>, %arg13: memref<1x32xf32, #tpu.memory_space<vmem>>, %arg14: memref<2x8x32xf32, #tpu.memory_space<vmem>>, %arg15: memref<2x32xf32, #tpu.memory_space<vmem>>, %arg16: memref<2x32xf32, #tpu.memory_space<vmem>>, %arg17: memref<2x8xf32, #tpu.memory_space<vmem>>, %arg18: memref<2x8xf32, #tpu.memory_space<vmem>>, %arg19: memref<2x8xf32, #tpu.memory_space<vmem>>, %arg20: memref<8x2x256xf32, #tpu.memory_space<vmem>>, %arg21: memref<8x2x32xf32, #tpu.memory_space<vmem>>) attributes {dimension_semantics = [#tpu.dimension_semantics<arbitrary>], iteration_bounds = array<i64: 1>, scalar_prefetch = 0 : i64, scratch_operands = 2 : i64, tpu.core_type = #tpu.core_type<tc>, window_params = [{pipeline_mode = #tpu.pipeline_mode<synchronous>, transform_indices = @transform_0, window_bounds = array<i64: 8, 2, 16>}, {pipeline_mode = #tpu.pipeline_mode<synchronous>, transform_indices = @transform_1, window_bounds = array<i64: 2, 1>}, {pipeline_mode = #tpu.pipeline_mode<synchronous>, transform_indices = @transform_2, window_bounds = array<i64: 16, 256>}, {pipeline_mode = #tpu.pipeline_mode<synchronous>, transform_indices = @transform_3, window_bounds = array<i64: 1, 256>}, {pipeline_mode = #tpu.pipeline_mode<synchronous>, transform_indices = @transform_4, window_bounds = array<i64: 32, 128>}, {pipeline_mode = #tpu.pipeline_mode<synchronous>, transform_indices = @transform_5, window_bounds = array<i64: 32, 128>}, {pipeline_mode = #tpu.pipeline_mode<synchronous>, transform_indices = @transform_6, window_bounds = array<i64: 2, 32>}, {pipeline_mode = #tpu.pipeline_mode<synchronous>, transform_indices = @transform_7, window_bounds = array<i64: 2, 32>}, {pipeline_mode = #tpu.pipeline_mode<synchronous>, transform_indices = @transform_8, window_bounds = array<i64: 2, 8>}, {pipeline_mode = #tpu.pipeline_mode<synchronous>, transform_indices = @transform_9, window_bounds = array<i64: 32, 16>}, {pipeline_mode = #tpu.pipeline_mode<synchronous>, transform_indices = @transform_10, window_bounds = array<i64: 1, 16>}, {pipeline_mode = #tpu.pipeline_mode<synchronous>, transform_indices = @transform_11, window_bounds = array<i64: 8, 32>}, {pipeline_mode = #tpu.pipeline_mode<synchronous>, transform_indices = @transform_12, window_bounds = array<i64: 1, 32>}, {pipeline_mode = #tpu.pipeline_mode<synchronous>, transform_indices = @transform_13, window_bounds = array<i64: 2, 8, 32>}, {pipeline_mode = #tpu.pipeline_mode<synchronous>, transform_indices = @transform_14, window_bounds = array<i64: 2, 32>}, {pipeline_mode = #tpu.pipeline_mode<synchronous>, transform_indices = @transform_15, window_bounds = array<i64: 2, 32>}, {pipeline_mode = #tpu.pipeline_mode<synchronous>, transform_indices = @transform_16, window_bounds = array<i64: 2, 8>}, {pipeline_mode = #tpu.pipeline_mode<synchronous>, transform_indices = @transform_17, window_bounds = array<i64: 2, 8>}, {pipeline_mode = #tpu.pipeline_mode<synchronous>, transform_indices = @transform_18, window_bounds = array<i64: 2, 8>}]} {
    %c0 = arith.constant 0 : index
    %c0_0 = arith.constant 0 : index
    %0 = vector.load %arg3[%c0, %c0_0] : memref<16x256xf32, #tpu.memory_space<vmem>>, vector<16x256xf32>
    %c0_1 = arith.constant 0 : index
    %c0_2 = arith.constant 0 : index
    %1 = vector.load %arg4[%c0_1, %c0_2] : memref<1x256xf32, #tpu.memory_space<vmem>>, vector<1x256xf32>
    %c0_3 = arith.constant 0 : index
    %c0_4 = arith.constant 0 : index
    %2 = vector.load %arg5[%c0_3, %c0_4] : memref<32x128xf32, #tpu.memory_space<vmem>>, vector<32x128xf32>
    %c0_5 = arith.constant 0 : index
    %c0_6 = arith.constant 0 : index
    %3 = vector.load %arg6[%c0_5, %c0_6] : memref<32x128xf32, #tpu.memory_space<vmem>>, vector<32x128xf32>
    %c0_7 = arith.constant 0 : index
    %c0_8 = arith.constant 0 : index
    %4 = vector.load %arg2[%c0_7, %c0_8] : memref<2x1xi32, #tpu.memory_space<vmem>>, vector<2x1xi32>
    %c0_i32 = arith.constant 0 : i32
    %c8_i32 = arith.constant 8 : i32
    %5 = arith.addi %c0_i32, %c8_i32 : i32
    %c1_i32 = arith.constant 1 : i32
    scf.for %arg22 = %c0_i32 to %5 step %c1_i32  : i32 {
      %51 = arith.index_cast %arg22 : i32 to index
      %c0_55 = arith.constant 0 : index
      %c0_56 = arith.constant 0 : index
      %52 = vector.load %arg1[%51, %c0_55, %c0_56] : memref<8x2x16xf32, #tpu.memory_space<vmem>>, vector<1x2x16xf32>
      %53 = vector.shape_cast %52 : vector<1x2x16xf32> to vector<2x16xf32>
      %cst_57 = arith.constant dense<0.000000e+00> : vector<2x256xf32>
      %54 = tpu.matmul %53, %0, %cst_57 {dimension_numbers = #tpu.dot_dimension_numbers<[1], [0], [0], [1], [0, 0, 1, 1], [], []>} : vector<2x16xf32>, vector<16x256xf32>, vector<2x256xf32> -> vector<2x256xf32>
      %55 = vector.broadcast %1 : vector<1x256xf32> to vector<2x256xf32>
      %56 = arith.addf %54, %55 : vector<2x256xf32>
      %57 = arith.index_cast %arg22 : i32 to index
      %c0_58 = arith.constant 0 : index
      %c0_59 = arith.constant 0 : index
      %58 = vector.load %arg20[%57, %c0_58, %c0_59] : memref<8x2x256xf32, #tpu.memory_space<vmem>>, vector<1x2x256xf32>
      %59 = vector.shape_cast %58 : vector<1x2x256xf32> to vector<2x256xf32>
      %60 = vector.shape_cast %56 : vector<2x256xf32> to vector<1x2x256xf32>
      tpu.vector_store %arg20[%57, %c0_58, %c0_59], %60 {strides = array<i32>} : memref<8x2x256xf32, #tpu.memory_space<vmem>>, vector<1x2x256xf32>,
    }
    %c8_i32_9 = arith.constant 8 : i32
    %6 = tpu.iota {dimensions = array<i32: 1>} : vector<2x128xi32>
    %c64_i32 = arith.constant 64 : i32
    %7 = vector.broadcast %c64_i32 : i32 to vector<2x128xi32>
    %8 = arith.cmpi sge, %6, %7 : vector<2x128xi32>
    %c96_i32 = arith.constant 96 : i32
    %9 = vector.broadcast %c96_i32 : i32 to vector<2x128xi32>
    %10 = arith.cmpi slt, %6, %9 : vector<2x128xi32>
    %11 = arith.andi %8, %10 : vector<2x128xi1>
    %c0_10 = arith.constant 0 : index
    %c0_11 = arith.constant 0 : index
    %12 = vector.load %arg7[%c0_10, %c0_11] : memref<2x32xf32, #tpu.memory_space<vmem>>, vector<2x32xf32>
    %c0_12 = arith.constant 0 : index
    %c0_13 = arith.constant 0 : index
    %13 = vector.load %arg8[%c0_12, %c0_13] : memref<2x32xf32, #tpu.memory_space<vmem>>, vector<2x32xf32>
    %c0_i32_14 = arith.constant 0 : i32
    %c8_i32_15 = arith.constant 8 : i32
    %14 = arith.addi %c0_i32_14, %c8_i32_15 : i32
    %c1_i32_16 = arith.constant 1 : i32
    %15:2 = scf.for %arg22 = %c0_i32_14 to %14 step %c1_i32_16 iter_args(%arg23 = %12, %arg24 = %13) -> (vector<2x32xf32>, vector<2x32xf32>)  : i32 {
      %51 = vector.broadcast %arg22 : i32 to vector<2x1xi32>
      %52 = arith.cmpi slt, %51, %4 : vector<2x1xi32>
      %53 = arith.index_cast %arg22 : i32 to index
      %c0_55 = arith.constant 0 : index
      %c0_56 = arith.constant 0 : index
      %54 = vector.load %arg20[%53, %c0_55, %c0_56] : memref<8x2x256xf32, #tpu.memory_space<vmem>>, vector<1x2x256xf32>
      %55 = vector.shape_cast %54 : vector<1x2x256xf32> to vector<2x256xf32>
      %56 = vector.extract_strided_slice %55 {offsets = [0, 0], sizes = [2, 128], strides = [1, 1]} : vector<2x256xf32> to vector<2x128xf32>
      %cst_57 = arith.constant dense<0.000000e+00> : vector<2x128xf32>
      %57 = tpu.matmul %arg23, %2, %cst_57 {dimension_numbers = #tpu.dot_dimension_numbers<[1], [0], [0], [1], [0, 0, 1, 1], [], []>} : vector<2x32xf32>, vector<32x128xf32>, vector<2x128xf32> -> vector<2x128xf32>
      %58 = arith.addf %56, %57 : vector<2x128xf32>
      %59 = math.tanh %58 : vector<2x128xf32>
      %60 = arith.negf %58 : vector<2x128xf32>
      %61 = math.exp %60 : vector<2x128xf32>
      %cst_58 = arith.constant 1.000000e+00 : f32
      %62 = vector.broadcast %cst_58 : f32 to vector<2x128xf32>
      %63 = arith.addf %62, %61 : vector<2x128xf32>
      %64 = arith.divf %62, %63 : vector<2x128xf32>
      %65 = arith.select %11, %59, %64 : vector<2x128xi1>, vector<2x128xf32>
      %66 = vector.extract_strided_slice %65 {offsets = [0, 0], sizes = [2, 32], strides = [1, 1]} : vector<2x128xf32> to vector<2x32xf32>
      %67 = vector.extract_strided_slice %65 {offsets = [0, 32], sizes = [2, 32], strides = [1, 1]} : vector<2x128xf32> to vector<2x32xf32>
      %68 = vector.extract_strided_slice %65 {offsets = [0, 64], sizes = [2, 32], strides = [1, 1]} : vector<2x128xf32> to vector<2x32xf32>
      %69 = vector.extract_strided_slice %65 {offsets = [0, 96], sizes = [2, 32], strides = [1, 1]} : vector<2x128xf32> to vector<2x32xf32>
      %70 = arith.mulf %67, %arg24 : vector<2x32xf32>
      %71 = arith.mulf %66, %68 : vector<2x32xf32>
      %72 = arith.addf %70, %71 : vector<2x32xf32>
      %73 = math.tanh %72 : vector<2x32xf32>
      %74 = arith.mulf %69, %73 : vector<2x32xf32>
      %75 = vector.shape_cast %52 : vector<2x1xi1> to vector<2x1xi1>
      %76 = vector.broadcast %75 : vector<2x1xi1> to vector<2x32xi1>
      %77 = arith.select %76, %74, %arg23 : vector<2x32xi1>, vector<2x32xf32>
      %78 = vector.shape_cast %52 : vector<2x1xi1> to vector<2x1xi1>
      %79 = vector.broadcast %78 : vector<2x1xi1> to vector<2x32xi1>
      %80 = arith.select %79, %72, %arg24 : vector<2x32xi1>, vector<2x32xf32>
      scf.yield %77, %80 : vector<2x32xf32>, vector<2x32xf32>
    }
    %c8_i32_17 = arith.constant 8 : i32
    %c0_18 = arith.constant 0 : index
    %c0_19 = arith.constant 0 : index
    %16 = vector.load %arg15[%c0_18, %c0_19] : memref<2x32xf32, #tpu.memory_space<vmem>>, vector<2x32xf32>
    tpu.vector_store %arg15[%c0_18, %c0_19], %15#0 {strides = array<i32>} : memref<2x32xf32, #tpu.memory_space<vmem>>, vector<2x32xf32>,
    %c0_20 = arith.constant 0 : index
    %c0_21 = arith.constant 0 : index
    %17 = vector.load %arg16[%c0_20, %c0_21] : memref<2x32xf32, #tpu.memory_space<vmem>>, vector<2x32xf32>
    tpu.vector_store %arg16[%c0_20, %c0_21], %15#1 {strides = array<i32>} : memref<2x32xf32, #tpu.memory_space<vmem>>, vector<2x32xf32>,
    %c0_22 = arith.constant 0 : index
    %c0_23 = arith.constant 0 : index
    %18 = vector.load %arg10[%c0_22, %c0_23] : memref<32x16xf32, #tpu.memory_space<vmem>>, vector<32x16xf32>
    %cst = arith.constant dense<0.000000e+00> : vector<2x16xf32>
    %19 = tpu.matmul %15#0, %18, %cst {dimension_numbers = #tpu.dot_dimension_numbers<[1], [0], [0], [1], [0, 0, 1, 1], [], []>} : vector<2x32xf32>, vector<32x16xf32>, vector<2x16xf32> -> vector<2x16xf32>
    %c0_24 = arith.constant 0 : index
    %c0_25 = arith.constant 0 : index
    %20 = vector.load %arg11[%c0_24, %c0_25] : memref<1x16xf32, #tpu.memory_space<vmem>>, vector<1x16xf32>
    %21 = vector.broadcast %20 : vector<1x16xf32> to vector<2x16xf32>
    %22 = arith.addf %19, %21 : vector<2x16xf32>
    %23 = vector.extract_strided_slice %22 {offsets = [0, 0], sizes = [2, 8], strides = [1, 1]} : vector<2x16xf32> to vector<2x8xf32>
    %24 = vector.extract_strided_slice %22 {offsets = [0, 8], sizes = [2, 8], strides = [1, 1]} : vector<2x16xf32> to vector<2x8xf32>
    %c0_26 = arith.constant 0 : index
    %c0_27 = arith.constant 0 : index
    %25 = vector.load %arg9[%c0_26, %c0_27] : memref<2x8xf32, #tpu.memory_space<vmem>>, vector<2x8xf32>
    %cst_28 = arith.constant 5.000000e-01 : f32
    %26 = vector.broadcast %cst_28 : f32 to vector<2x8xf32>
    %27 = arith.mulf %26, %24 : vector<2x8xf32>
    %28 = math.exp %27 : vector<2x8xf32>
    %29 = arith.mulf %25, %28 : vector<2x8xf32>
    %30 = arith.addf %29, %23 : vector<2x8xf32>
    %c0_29 = arith.constant 0 : index
    %c0_30 = arith.constant 0 : index
    %31 = vector.load %arg12[%c0_29, %c0_30] : memref<8x32xf32, #tpu.memory_space<vmem>>, vector<8x32xf32>
    %cst_31 = arith.constant dense<0.000000e+00> : vector<2x32xf32>
    %32 = tpu.matmul %30, %31, %cst_31 {dimension_numbers = #tpu.dot_dimension_numbers<[1], [0], [0], [1], [0, 0, 1, 1], [], []>} : vector<2x8xf32>, vector<8x32xf32>, vector<2x32xf32> -> vector<2x32xf32>
    %c0_32 = arith.constant 0 : index
    %c0_33 = arith.constant 0 : index
    %33 = vector.load %arg13[%c0_32, %c0_33] : memref<1x32xf32, #tpu.memory_space<vmem>>, vector<1x32xf32>
    %34 = vector.broadcast %33 : vector<1x32xf32> to vector<2x32xf32>
    %35 = arith.addf %32, %34 : vector<2x32xf32>
    %c0_34 = arith.constant 0 : index
    %c0_35 = arith.constant 0 : index
    %36 = vector.load %arg17[%c0_34, %c0_35] : memref<2x8xf32, #tpu.memory_space<vmem>>, vector<2x8xf32>
    tpu.vector_store %arg17[%c0_34, %c0_35], %23 {strides = array<i32>} : memref<2x8xf32, #tpu.memory_space<vmem>>, vector<2x8xf32>,
    %c0_36 = arith.constant 0 : index
    %c0_37 = arith.constant 0 : index
    %37 = vector.load %arg18[%c0_36, %c0_37] : memref<2x8xf32, #tpu.memory_space<vmem>>, vector<2x8xf32>
    tpu.vector_store %arg18[%c0_36, %c0_37], %24 {strides = array<i32>} : memref<2x8xf32, #tpu.memory_space<vmem>>, vector<2x8xf32>,
    %c0_38 = arith.constant 0 : index
    %c0_39 = arith.constant 0 : index
    %38 = vector.load %arg19[%c0_38, %c0_39] : memref<2x8xf32, #tpu.memory_space<vmem>>, vector<2x8xf32>
    tpu.vector_store %arg19[%c0_38, %c0_39], %30 {strides = array<i32>} : memref<2x8xf32, #tpu.memory_space<vmem>>, vector<2x8xf32>,
    %c0_i32_40 = arith.constant 0 : i32
    %c8_i32_41 = arith.constant 8 : i32
    %39 = arith.addi %c0_i32_40, %c8_i32_41 : i32
    %c1_i32_42 = arith.constant 1 : i32
    %40:2 = scf.for %arg22 = %c0_i32_40 to %39 step %c1_i32_42 iter_args(%arg23 = %35, %arg24 = %35) -> (vector<2x32xf32>, vector<2x32xf32>)  : i32 {
      %51 = vector.broadcast %arg22 : i32 to vector<2x1xi32>
      %52 = arith.cmpi slt, %51, %4 : vector<2x1xi32>
      %53 = arith.index_cast %arg22 : i32 to index
      %c0_55 = arith.constant 0 : index
      %c0_56 = arith.constant 0 : index
      %54 = vector.load %arg20[%53, %c0_55, %c0_56] : memref<8x2x256xf32, #tpu.memory_space<vmem>>, vector<1x2x256xf32>
      %55 = vector.shape_cast %54 : vector<1x2x256xf32> to vector<2x256xf32>
      %56 = vector.extract_strided_slice %55 {offsets = [0, 128], sizes = [2, 128], strides = [1, 1]} : vector<2x256xf32> to vector<2x128xf32>
      %cst_57 = arith.constant dense<0.000000e+00> : vector<2x128xf32>
      %57 = tpu.matmul %arg23, %3, %cst_57 {dimension_numbers = #tpu.dot_dimension_numbers<[1], [0], [0], [1], [0, 0, 1, 1], [], []>} : vector<2x32xf32>, vector<32x128xf32>, vector<2x128xf32> -> vector<2x128xf32>
      %58 = arith.addf %56, %57 : vector<2x128xf32>
      %59 = math.tanh %58 : vector<2x128xf32>
      %60 = arith.negf %58 : vector<2x128xf32>
      %61 = math.exp %60 : vector<2x128xf32>
      %cst_58 = arith.constant 1.000000e+00 : f32
      %62 = vector.broadcast %cst_58 : f32 to vector<2x128xf32>
      %63 = arith.addf %62, %61 : vector<2x128xf32>
      %64 = arith.divf %62, %63 : vector<2x128xf32>
      %65 = arith.select %11, %59, %64 : vector<2x128xi1>, vector<2x128xf32>
      %66 = vector.extract_strided_slice %65 {offsets = [0, 0], sizes = [2, 32], strides = [1, 1]} : vector<2x128xf32> to vector<2x32xf32>
      %67 = vector.extract_strided_slice %65 {offsets = [0, 32], sizes = [2, 32], strides = [1, 1]} : vector<2x128xf32> to vector<2x32xf32>
      %68 = vector.extract_strided_slice %65 {offsets = [0, 64], sizes = [2, 32], strides = [1, 1]} : vector<2x128xf32> to vector<2x32xf32>
      %69 = vector.extract_strided_slice %65 {offsets = [0, 96], sizes = [2, 32], strides = [1, 1]} : vector<2x128xf32> to vector<2x32xf32>
      %70 = arith.mulf %67, %arg24 : vector<2x32xf32>
      %71 = arith.mulf %66, %68 : vector<2x32xf32>
      %72 = arith.addf %70, %71 : vector<2x32xf32>
      %73 = math.tanh %72 : vector<2x32xf32>
      %74 = arith.mulf %69, %73 : vector<2x32xf32>
      %75 = vector.shape_cast %52 : vector<2x1xi1> to vector<2x1xi1>
      %76 = vector.broadcast %75 : vector<2x1xi1> to vector<2x32xi1>
      %77 = arith.select %76, %74, %arg23 : vector<2x32xi1>, vector<2x32xf32>
      %78 = vector.shape_cast %52 : vector<2x1xi1> to vector<2x1xi1>
      %79 = vector.broadcast %78 : vector<2x1xi1> to vector<2x32xi1>
      %80 = arith.select %79, %72, %arg24 : vector<2x32xi1>, vector<2x32xf32>
      %cst_59 = arith.constant 0.000000e+00 : f32
      %81 = vector.shape_cast %52 : vector<2x1xi1> to vector<2x1xi1>
      %82 = vector.broadcast %81 : vector<2x1xi1> to vector<2x32xi1>
      %83 = vector.broadcast %cst_59 : f32 to vector<2x32xf32>
      %84 = arith.select %82, %74, %83 : vector<2x32xi1>, vector<2x32xf32>
      %85 = arith.index_cast %arg22 : i32 to index
      %c0_60 = arith.constant 0 : index
      %c0_61 = arith.constant 0 : index
      %86 = vector.load %arg21[%85, %c0_60, %c0_61] : memref<8x2x32xf32, #tpu.memory_space<vmem>>, vector<1x2x32xf32>
      %87 = vector.shape_cast %86 : vector<1x2x32xf32> to vector<2x32xf32>
      %88 = vector.shape_cast %84 : vector<2x32xf32> to vector<1x2x32xf32>
      tpu.vector_store %arg21[%85, %c0_60, %c0_61], %88 {strides = array<i32>} : memref<8x2x32xf32, #tpu.memory_space<vmem>>, vector<1x2x32xf32>,
      scf.yield %77, %80 : vector<2x32xf32>, vector<2x32xf32>
    }
    %c8_i32_43 = arith.constant 8 : i32
    %c0_44 = arith.constant 0 : index
    %c0_45 = arith.constant 0 : index
    %c0_46 = arith.constant 0 : index
    %41 = vector.load %arg21[%c0_44, %c0_45, %c0_46] : memref<8x2x32xf32, #tpu.memory_space<vmem>>, vector<8x1x32xf32>
    %42 = vector.shape_cast %41 : vector<8x1x32xf32> to vector<8x32xf32>
    %c0_47 = arith.constant 0 : index
    %c0_48 = arith.constant 0 : index
    %c0_49 = arith.constant 0 : index
    %43 = vector.load %arg14[%c0_47, %c0_48, %c0_49] : memref<2x8x32xf32, #tpu.memory_space<vmem>>, vector<1x8x32xf32>
    %44 = vector.shape_cast %43 : vector<1x8x32xf32> to vector<8x32xf32>
    %45 = vector.shape_cast %42 : vector<8x32xf32> to vector<1x8x32xf32>
    tpu.vector_store %arg14[%c0_47, %c0_48, %c0_49], %45 {strides = array<i32>} : memref<2x8x32xf32, #tpu.memory_space<vmem>>, vector<1x8x32xf32>,
    %c0_50 = arith.constant 0 : index
    %c1 = arith.constant 1 : index
    %c0_51 = arith.constant 0 : index
    %46 = vector.load %arg21[%c0_50, %c1, %c0_51] : memref<8x2x32xf32, #tpu.memory_space<vmem>>, vector<8x1x32xf32>
    %47 = vector.shape_cast %46 : vector<8x1x32xf32> to vector<8x32xf32>
    %c1_52 = arith.constant 1 : index
    %c0_53 = arith.constant 0 : index
    %c0_54 = arith.constant 0 : index
    %48 = vector.load %arg14[%c1_52, %c0_53, %c0_54] : memref<2x8x32xf32, #tpu.memory_space<vmem>>, vector<1x8x32xf32>
    %49 = vector.shape_cast %48 : vector<1x8x32xf32> to vector<8x32xf32>
    %50 = vector.shape_cast %47 : vector<8x32xf32> to vector<1x8x32xf32>
    tpu.vector_store %arg14[%c1_52, %c0_53, %c0_54], %50 {strides = array<i32>} : memref<2x8x32xf32, #tpu.memory_space<vmem>>, vector<1x8x32xf32>,
    return
  }
  func.func @transform_0(%arg0: i32) -> (i32, i32, i32) {
    %c0_i32 = arith.constant 0 : i32
    %c0_i32_0 = arith.constant 0 : i32
    %c0_i32_1 = arith.constant 0 : i32
    %c0_i32_2 = arith.constant 0 : i32
    return %c0_i32, %c0_i32_0, %c0_i32_1 : i32, i32, i32
  }
  func.func @transform_1(%arg0: i32) -> (i32, i32) {
    %c0_i32 = arith.constant 0 : i32
    %c0_i32_0 = arith.constant 0 : i32
    %c0_i32_1 = arith.constant 0 : i32
    return %c0_i32, %c0_i32_0 : i32, i32
  }
  func.func @transform_2(%arg0: i32) -> (i32, i32) {
    %c0_i32 = arith.constant 0 : i32
    %c0_i32_0 = arith.constant 0 : i32
    %c0_i32_1 = arith.constant 0 : i32
    return %c0_i32, %c0_i32_0 : i32, i32
  }
  func.func @transform_3(%arg0: i32) -> (i32, i32) {
    %c0_i32 = arith.constant 0 : i32
    %c0_i32_0 = arith.constant 0 : i32
    %c0_i32_1 = arith.constant 0 : i32
    return %c0_i32, %c0_i32_0 : i32, i32
  }
  func.func @transform_4(%arg0: i32) -> (i32, i32) {
    %c0_i32 = arith.constant 0 : i32
    %c0_i32_0 = arith.constant 0 : i32
    %c0_i32_1 = arith.constant 0 : i32
    return %c0_i32, %c0_i32_0 : i32, i32
  }
  func.func @transform_5(%arg0: i32) -> (i32, i32) {
    %c0_i32 = arith.constant 0 : i32
    %c0_i32_0 = arith.constant 0 : i32
    %c0_i32_1 = arith.constant 0 : i32
    return %c0_i32, %c0_i32_0 : i32, i32
  }
  func.func @transform_6(%arg0: i32) -> (i32, i32) {
    %c0_i32 = arith.constant 0 : i32
    %c0_i32_0 = arith.constant 0 : i32
    %c0_i32_1 = arith.constant 0 : i32
    return %c0_i32, %c0_i32_0 : i32, i32
  }
  func.func @transform_7(%arg0: i32) -> (i32, i32) {
    %c0_i32 = arith.constant 0 : i32
    %c0_i32_0 = arith.constant 0 : i32
    %c0_i32_1 = arith.constant 0 : i32
    return %c0_i32, %c0_i32_0 : i32, i32
  }
  func.func @transform_8(%arg0: i32) -> (i32, i32) {
    %c0_i32 = arith.constant 0 : i32
    %c0_i32_0 = arith.constant 0 : i32
    %c0_i32_1 = arith.constant 0 : i32
    return %c0_i32, %c0_i32_0 : i32, i32
  }
  func.func @transform_9(%arg0: i32) -> (i32, i32) {
    %c0_i32 = arith.constant 0 : i32
    %c0_i32_0 = arith.constant 0 : i32
    %c0_i32_1 = arith.constant 0 : i32
    return %c0_i32, %c0_i32_0 : i32, i32
  }
  func.func @transform_10(%arg0: i32) -> (i32, i32) {
    %c0_i32 = arith.constant 0 : i32
    %c0_i32_0 = arith.constant 0 : i32
    %c0_i32_1 = arith.constant 0 : i32
    return %c0_i32, %c0_i32_0 : i32, i32
  }
  func.func @transform_11(%arg0: i32) -> (i32, i32) {
    %c0_i32 = arith.constant 0 : i32
    %c0_i32_0 = arith.constant 0 : i32
    %c0_i32_1 = arith.constant 0 : i32
    return %c0_i32, %c0_i32_0 : i32, i32
  }
  func.func @transform_12(%arg0: i32) -> (i32, i32) {
    %c0_i32 = arith.constant 0 : i32
    %c0_i32_0 = arith.constant 0 : i32
    %c0_i32_1 = arith.constant 0 : i32
    return %c0_i32, %c0_i32_0 : i32, i32
  }
  func.func @transform_13(%arg0: i32) -> (i32, i32, i32) {
    %c0_i32 = arith.constant 0 : i32
    %c0_i32_0 = arith.constant 0 : i32
    %c0_i32_1 = arith.constant 0 : i32
    %c0_i32_2 = arith.constant 0 : i32
    return %c0_i32, %c0_i32_0, %c0_i32_1 : i32, i32, i32
  }
  func.func @transform_14(%arg0: i32) -> (i32, i32) {
    %c0_i32 = arith.constant 0 : i32
    %c0_i32_0 = arith.constant 0 : i32
    %c0_i32_1 = arith.constant 0 : i32
    return %c0_i32, %c0_i32_0 : i32, i32
  }
  func.func @transform_15(%arg0: i32) -> (i32, i32) {
    %c0_i32 = arith.constant 0 : i32
    %c0_i32_0 = arith.constant 0 : i32
    %c0_i32_1 = arith.constant 0 : i32
    return %c0_i32, %c0_i32_0 : i32, i32
  }
  func.func @transform_16(%arg0: i32) -> (i32, i32) {
    %c0_i32 = arith.constant 0 : i32
    %c0_i32_0 = arith.constant 0 : i32
    %c0_i32_1 = arith.constant 0 : i32
    return %c0_i32, %c0_i32_0 : i32, i32
  }
  func.func @transform_17(%arg0: i32) -> (i32, i32) {
    %c0_i32 = arith.constant 0 : i32
    %c0_i32_0 = arith.constant 0 : i32
    %c0_i32_1 = arith.constant 0 : i32
    return %c0_i32, %c0_i32_0 : i32, i32
  }
  func.func @transform_18(%arg0: i32) -> (i32, i32) {
    %c0_i32 = arith.constant 0 : i32
    %c0_i32_0 = arith.constant 0 : i32
    %c0_i32_1 = arith.constant 0 : i32
    return %c0_i32, %c0_i32_0 : i32, i32
  }
}

</mosaic_0001>

<llo_original>
// kernel: t_vae_forward.3
$region0: #{t_vae_forward.3}
  #allocation0 [shape = 'u32[]', space=smem, size = 0x4, offset = 0x4, fixed_abs, tag = 'smem constant byte address 0x4 - core index']
  #allocation1 [shape = 'u32[144,128]{1,0:T(1,128)}', space=vmem, size = 0x12000, scoped, tag = 'internal scratch']
  %s0 = inlined_call_operand.vmem [shape: f32[16,32], index: 0, kind: input, shape index: {}]
  %s1 = inlined_call_operand.vmem [shape: f32[32,50], index: 1, kind: input, shape index: {}]
  %s2 = inlined_call_operand.vmem [shape: f32[1,50], index: 2, kind: input, shape index: {}]
  %s3 = inlined_call_operand.hbm [shape: f32[16,50], index: 3, kind: output, shape index: {}]
  %s4 = sld [smem:[#allocation0]]
  $region22: #{t_vae_forward.3} parent=0
    _
  %s6 = ssub.s32 1, %s4
  %s7 = scalar_select 0, %s6, %s4
  $region1: #{t_vae_forward.3} parent=0
    #allocation2 [shape = 'u8[8192]{0}', space=vmem, size = 0x2000, scoped, tag = 'output window, operand 0, single buffered']
    #allocation3 [shape = 's32[1]{0}', space=sflag, size = 0x4, scoped, tag = 'scoped memory for t_vae_forward.3']
    %8 = vsyncpa [#allocation3], 0
    // Predicated region
    $region2: #{t_vae_forward.3} parent=1 // pred_check
      _
    $region3: #{t_vae_forward.3} parent=1 // pred_check_branch
      %10 = sbr.rel (0) target = $region5
    $region4: #{t_vae_forward.3} parent=1 // pred_region
      _
    $region5: #{t_vae_forward.3} parent=1 // pred_fallthru
      _
    // Predicated region
    $region6: #{t_vae_forward.3} parent=1 // pred_check
      _
    $region7: #{t_vae_forward.3} parent=1 // pred_check_branch
      %12 = sbr.rel (0) target = $region9
    $region8: #{t_vae_forward.3} parent=1 // pred_region
      _
    $region9: #{t_vae_forward.3} parent=1 // pred_fallthru
      _
    // Predicated region
    $region10: #{t_vae_forward.3} parent=1 // pred_check
      _
    $region11: #{t_vae_forward.3} parent=1 // pred_check_branch
      %14 = sbr.rel (0) target = $region13
    $region12: #{t_vae_forward.3} parent=1 // pred_region
      _
    $region13: #{t_vae_forward.3} parent=1 // pred_fallthru
      _
    %v15 = vld [vmem:[%s0] sm:$0xff]
    %v16 = vld [vmem:[%s0 + $0x8] sm:$0xff]
    %v17 = vld [vmem:[%s1] sm:$0xff]
    %v18 = vld [vmem:[%s1 + $0x8] sm:$0xff]
    %v19 = vld [vmem:[%s1 + $0x10] sm:$0xff]
    %v20 = vld [vmem:[%s1 + $0x18] sm:$0xff]
    %v21 = vld [vmem:[%s2] sm:$0x1]
    %v23 = vlaneseq
    %v24 = vshrl.u32 %v23, 7
    %v25 = vsub.s32 0, %v24
    %v26 = vrot.slane %v21, %v25
    %vm28 = vcmask 261120
    %v30 = vsel %vm28, %v15, 0
    %v33 = vsel %vm28, %v16, 0
    %35 = vmatprep.subr.mxu0 0.0
    %36 = vmatpush1.msra.mxu0 %v17
    %37 = vmatprep.subr.mxu0 0.0
    %38 = vmatpush1.msra.mxu0 %v18
    %39 = vmatprep.subr.mxu0 0.0
    %40 = vmatpush1.msra.mxu0 %v19
    %41 = vmatprep.subr.mxu0 0.0
    %42 = vmatpush1.msra.mxu0 %v20
    %43 = vmatprep.subr.mxu0 0.0
    %44 = vmatpush1.msra.mxu0 0.0
    %45 = vmatprep.subr.mxu0 0.0
    %46 = vmatpush1.msra.mxu0 0.0
    %47 = vmatprep.subr.mxu0 0.0
    %48 = vmatpush1.msra.mxu0 0.0
    %49 = vmatprep.subr.mxu0 0.0
    %50 = vmatpush1.msra.mxu0 0.0
    %51 = vmatprep.subr.mxu0 0.0
    %52 = vmatpush1.msra.mxu0 0.0
    %53 = vmatprep.subr.mxu0 0.0
    %54 = vmatpush1.msra.mxu0 0.0
    %55 = vmatprep.subr.mxu0 0.0
    %56 = vmatpush1.msra.mxu0 0.0
    %57 = vmatprep.subr.mxu0 0.0
    %58 = vmatpush1.msra.mxu0 0.0
    %59 = vmatprep.subr.mxu0 0.0
    %60 = vmatpush1.msra.mxu0 0.0
    %61 = vmatprep.subr.mxu0 0.0
    %62 = vmatpush1.msra.mxu0 0.0
    %63 = vmatprep.subr.mxu0 0.0
    %64 = vmatpush1.msra.mxu0 0.0
    %65 = vmatprep.subr.mxu0 0.0
    %66 = vmatpush1.msra.mxu0 0.0
    %67 = vmatprep.subr.mxu0 0.0
    %68 = vmatpush1.msra.mxu0 0.0
    %69 = vmatprep.subr.mxu0 0.0
    %70 = vmatpush1.msra.mxu0 0.0
    %71 = vmatprep.subr.mxu0 0.0
    %72 = vmatpush1.msra.mxu0 0.0
    %73 = vmatprep.subr.mxu0 0.0
    %74 = vmatpush1.msra.mxu0 0.0
    %75 = vmatprep.subr.mxu0 0.0
    %76 = vmatpush1.msra.mxu0 0.0
    %77 = vmatprep.subr.mxu0 0.0
    %78 = vmatpush1.msra.mxu0 0.0
    %79 = vmatprep.subr.mxu0 0.0
    %80 = vmatpush1.msra.mxu0 0.0
    %81 = vmatprep.subr.mxu0 0.0
    %82 = vmatpush1.msra.mxu0 0.0
    %83 = vmatprep.subr.mxu0 0.0
    %84 = vmatpush1.msra.mxu0 0.0
    %85 = vmatprep.subr.mxu0 0.0
    %86 = vmatpush1.msra.mxu0 0.0
    %87 = vmatprep.subr.mxu0 0.0
    %88 = vmatpush1.msra.mxu0 0.0
    %89 = vmatprep.subr.mxu0 0.0
    %90 = vmatpush1.msra.mxu0 0.0
    %91 = vmatprep.subr.mxu0 0.0
    %92 = vmatpush1.msra.mxu0 0.0
    %93 = vmatprep.subr.mxu0 0.0
    %94 = vmatpush1.msra.mxu0 0.0
    %95 = vmatprep.subr.mxu0 0.0
    %96 = vmatpush1.msra.mxu0 0.0
    %97 = vmatprep.subr.mxu0 0.0
    %98 = vmatpush1.msra.mxu0 0.0
    %99 = vmatprep.mubr.f32.mxu0 0.0
    %100 = vmatmul.mubr.f32.gmra.mrb[0].mxu0 %v30
    %v101 = vpop.f32.mrb[0].mxu0
    %v102 = vadd.f32 %v26, %v101
    %v103 = vpop.f32.mrb[0].mxu0
    %104 = vmatprep.mubr.f32.mxu0 0.0
    %105 = vmatmul.mubr.f32.gmra.mrb[0].mxu0 %v33
    %v106 = vpop.f32.mrb[0].mxu0
    %v107 = vadd.f32 %v26, %v106
    %v108 = vpop.f32.mrb[0].mxu0
    %109 = vdwg.mxu0
    %vm110 = vcmask 408576
    %v111 = vsel %vm110, %v102, -inf
    %112 = vmax.xlane.f32.xlu0 %v111
    %v113 = vpop.xlane.xlu0 %112
    %v114 = vsel %vm110, %v107, -inf
    %115 = vmax.xlane.f32.xlu0 %v114
    %v116 = vpop.xlane.xlu0 %115
    %v117 = vsub.f32 %v102, %v113
    %v118 = vsub.f32 %v107, %v116
    %v119 = vmul.f32 %v117, 1.442695
    %v120 = vpow.pop %v119
    %v121 = vmul.f32 %v118, 1.442695
    %v122 = vpow.pop %v121
    %v123 = vsel %vm110, %v120, 0.0
    %124 = vadd.xlane.f32.xlu0 %v123
    %v125 = vpop.xlane.xlu0 %124
    %v126 = vsel %vm110, %v122, 0.0
    %127 = vadd.xlane.f32.xlu0 %v126
    %v128 = vpop.xlane.xlu0 %127
    %v129 = vlog2.pop %v125
    %v130 = vmul.f32 %v129, 0.6931472
    %v131 = vlog2.pop %v128
    %v132 = vmul.f32 %v131, 0.6931472
    %v133 = vsub.f32 %v117, %v130
    %v134 = vsub.f32 %v118, %v132
    %135 = vst.msk [vmem:[#allocation2] sm:$0xff] %vm110, %v133
    %136 = vst.msk [vmem:[#allocation2 + $0x8] sm:$0xff] %vm110, %v134
    // Predicated region
    $region14: #{t_vae_forward.3} parent=1 // pred_check
      _
    $region15: #{t_vae_forward.3} parent=1 // pred_check_branch
      %138 = sbr.rel (0) target = $region17
    $region16: #{t_vae_forward.3} parent=1 // pred_region
      %s140 = ssub.s32 256, 256
      %141 = vsyncadd [#allocation3], %s140
      %s142 = sshll.u32 [#allocation2], 4
      %s143 = int_to_ptr.vmem [resolvable:$true] %s142
      %148 = dma.vmem_to_hbm [thread:$0]  %s143, 256, %s3, [#allocation3], 128, 128, 8
    $region17: #{t_vae_forward.3} parent=1 // pred_fallthru
      _
    // Predicated region
    $region18: #{t_vae_forward.3} parent=1 // pred_check
      _
    $region19: #{t_vae_forward.3} parent=1 // pred_check_branch
      %150 = sbr.rel (0) target = $region21
    $region20: #{t_vae_forward.3} parent=1 // pred_region
      %151 = dma.done [#allocation3], 256
    $region21: #{t_vae_forward.3} parent=1 // pred_fallthru
      _
    %152 = vsyncpa [#allocation3], 1

// kernel: t_vae_forward.2
$region0: #{t_vae_forward.2}
  #allocation0 [shape = 'u32[]', space=smem, size = 0x4, offset = 0x4, fixed_abs, tag = 'smem constant byte address 0x4 - core index']
  #allocation1 [shape = 'u32[144,128]{1,0:T(1,128)}', space=vmem, size = 0x12000, scoped, tag = 'internal scratch']
  #allocation2 [shape = 'f32[8,2,256]{2,1,0:T(2,128)}', space=vmem, size = 0x4000, scoped, tag = 'scratch operand']
  #allocation3 [shape = 'f32[8,2,32]{2,1,0:T(2,128)}', space=vmem, size = 0x2000, scoped, tag = 'scratch operand']
  %s0 = inlined_call_operand.vmem [shape: f32[8,2,16], index: 0, kind: input, shape index: {}]
  %s1 = inlined_call_operand.vmem [shape: s32[2,1], index: 1, kind: input, shape index: {}]
  %s2 = inlined_call_operand.vmem [shape: f32[16,256], index: 2, kind: input, shape index: {}]
  %s3 = inlined_call_operand.vmem [shape: f32[1,256], index: 3, kind: input, shape index: {}]
  %s4 = inlined_call_operand.vmem [shape: f32[32,128], index: 4, kind: input, shape index: {}]
  %s5 = inlined_call_operand.vmem [shape: f32[32,128], index: 5, kind: input, shape index: {}]
  %s6 = inlined_call_operand.vmem [shape: f32[2,32], index: 6, kind: input, shape index: {}]
  %s7 = inlined_call_operand.vmem [shape: f32[2,32], index: 7, kind: input, shape index: {}]
  %s8 = inlined_call_operand.vmem [shape: f32[2,8], index: 8, kind: input, shape index: {}]
  %s9 = inlined_call_operand.vmem [shape: f32[32,16], index: 9, kind: input, shape index: {}]
  %s10 = inlined_call_operand.vmem [shape: f32[1,16], index: 10, kind: input, shape index: {}]
  %s11 = inlined_call_operand.vmem [shape: f32[8,32], index: 11, kind: input, shape index: {}]
  %s12 = inlined_call_operand.vmem [shape: f32[1,32], index: 12, kind: input, shape index: {}]
  %s13 = inlined_call_operand.vmem [shape: f32[2,8,32], index: 13, kind: output, shape index: {0}]
  %s14 = inlined_call_operand.hbm [shape: f32[2,32], index: 14, kind: output, shape index: {1}]
  %s15 = inlined_call_operand.hbm [shape: f32[2,32], index: 15, kind: output, shape index: {2}]
  %s16 = inlined_call_operand.hbm [shape: f32[2,8], index: 16, kind: output, shape index: {3}]
  %s17 = inlined_call_operand.hbm [shape: f32[2,8], index: 17, kind: output, shape index: {4}]
  %s18 = inlined_call_operand.hbm [shape: f32[2,8], index: 18, kind: output, shape index: {5}]
  %19 = xla_tuple %s13, %s14, %s15, %s16, %s17, %s18
  %s20 = sld [smem:[#allocation0]]
  $region123: #{t_vae_forward.2} parent=0
    _
  %s22 = ssub.s32 1, %s20
  %s23 = scalar_select 0, %s22, %s20
  $region1: #{t_vae_forward.2} parent=0
    #allocation4 [shape = 'u8[1024]{0}', space=vmem, size = 0x400, scoped, tag = 'output window, operand 1, single buffered']
    #allocation5 [shape = 's32[1]{0}', space=sflag, size = 0x4, scoped, tag = 'scoped memory for t_vae_forward.2']
    #allocation6 [shape = 'u8[1024]{0}', space=vmem, size = 0x400, scoped, tag = 'output window, operand 2, single buffered']
    #allocation7 [shape = 's32[1]{0}', space=sflag, size = 0x4, scoped, tag = 'scoped memory for t_vae_forward.2']
    #allocation8 [shape = 'u8[1024]{0}', space=vmem, size = 0x400, scoped, tag = 'output window, operand 3, single buffered']
    #allocation9 [shape = 'u8[1024]{0}', space=vmem, size = 0x400, scoped, tag = 'output window, operand 4, single buffered']
    #allocation10 [shape = 's32[1]{0}', space=sflag, size = 0x4, scoped, tag = 'scoped memory for t_vae_forward.2']
    #allocation11 [shape = 'u8[1024]{0}', space=vmem, size = 0x400, scoped, tag = 'output window, operand 5, single buffered']
    %24 = vsyncpa [#allocation5], 0
    %25 = vsyncpa [#allocation7], 0
    %26 = vsyncpa [#allocation10], 0
    // Predicated region
    $region2: #{t_vae_forward.2} parent=1 // pred_check
      _
    $region3: #{t_vae_forward.2} parent=1 // pred_check_branch
      %28 = sbr.rel (0) target = $region5
    $region4: #{t_vae_forward.2} parent=1 // pred_region
      _
    $region5: #{t_vae_forward.2} parent=1 // pred_fallthru
      _
    // Predicated region
    $region6: #{t_vae_forward.2} parent=1 // pred_check
      _
    $region7: #{t_vae_forward.2} parent=1 // pred_check_branch
      %30 = sbr.rel (0) target = $region9
    $region8: #{t_vae_forward.2} parent=1 // pred_region
      _
    $region9: #{t_vae_forward.2} parent=1 // pred_fallthru
      _
    // Predicated region
    $region10: #{t_vae_forward.2} parent=1 // pred_check
      _
    $region11: #{t_vae_forward.2} parent=1 // pred_check_branch
      %32 = sbr.rel (0) target = $region13
    $region12: #{t_vae_forward.2} parent=1 // pred_region
      _
    $region13: #{t_vae_forward.2} parent=1 // pred_fallthru
      _
    // Predicated region
    $region14: #{t_vae_forward.2} parent=1 // pred_check
      _
    $region15: #{t_vae_forward.2} parent=1 // pred_check_branch
      %34 = sbr.rel (0) target = $region17
    $region16: #{t_vae_forward.2} parent=1 // pred_region
      _
    $region17: #{t_vae_forward.2} parent=1 // pred_fallthru
      _
    // Predicated region
    $region18: #{t_vae_forward.2} parent=1 // pred_check
      _
    $region19: #{t_vae_forward.2} parent=1 // pred_check_branch
      %36 = sbr.rel (0) target = $region21
    $region20: #{t_vae_forward.2} parent=1 // pred_region
      _
    $region21: #{t_vae_forward.2} parent=1 // pred_fallthru
      _
    // Predicated region
    $region22: #{t_vae_forward.2} parent=1 // pred_check
      _
    $region23: #{t_vae_forward.2} parent=1 // pred_check_branch
      %38 = sbr.rel (0) target = $region25
    $region24: #{t_vae_forward.2} parent=1 // pred_region
      _
    $region25: #{t_vae_forward.2} parent=1 // pred_fallthru
      _
    // Predicated region
    $region26: #{t_vae_forward.2} parent=1 // pred_check
      _
    $region27: #{t_vae_forward.2} parent=1 // pred_check_branch
      %40 = sbr.rel (0) target = $region29
    $region28: #{t_vae_forward.2} parent=1 // pred_region
      _
    $region29: #{t_vae_forward.2} parent=1 // pred_fallthru
      _
    // Predicated region
    $region30: #{t_vae_forward.2} parent=1 // pred_check
      _
    $region31: #{t_vae_forward.2} parent=1 // pred_check_branch
      %42 = sbr.rel (0) target = $region33
    $region32: #{t_vae_forward.2} parent=1 // pred_region
      _
    $region33: #{t_vae_forward.2} parent=1 // pred_fallthru
      _
    // Predicated region
    $region34: #{t_vae_forward.2} parent=1 // pred_check
      _
    $region35: #{t_vae_forward.2} parent=1 // pred_check_branch
      %44 = sbr.rel (0) target = $region37
    $region36: #{t_vae_forward.2} parent=1 // pred_region
      _
    $region37: #{t_vae_forward.2} parent=1 // pred_fallthru
      _
    // Predicated region
    $region38: #{t_vae_forward.2} parent=1 // pred_check
      _
    $region39: #{t_vae_forward.2} parent=1 // pred_check_branch
      %46 = sbr.rel (0) target = $region41
    $region40: #{t_vae_forward.2} parent=1 // pred_region
      _
    $region41: #{t_vae_forward.2} parent=1 // pred_fallthru
      _
    // Predicated region
    $region42: #{t_vae_forward.2} parent=1 // pred_check
      _
    $region43: #{t_vae_forward.2} parent=1 // pred_check_branch
      %48 = sbr.rel (0) target = $region45
    $region44: #{t_vae_forward.2} parent=1 // pred_region
      _
    $region45: #{t_vae_forward.2} parent=1 // pred_fallthru
      _
    // Predicated region
    $region46: #{t_vae_forward.2} parent=1 // pred_check
      _
    $region47: #{t_vae_forward.2} parent=1 // pred_check_branch
      %50 = sbr.rel (0) target = $region49
    $region48: #{t_vae_forward.2} parent=1 // pred_region
      _
    $region49: #{t_vae_forward.2} parent=1 // pred_fallthru
      _
    // Predicated region
    $region50: #{t_vae_forward.2} parent=1 // pred_check
      _
    $region51: #{t_vae_forward.2} parent=1 // pred_check_branch
      %52 = sbr.rel (0) target = $region53
    $region52: #{t_vae_forward.2} parent=1 // pred_region
      _
    $region53: #{t_vae_forward.2} parent=1 // pred_fallthru
      _
    %v53 = vld [vmem:[%s2] sm:$0xff]
    %v54 = vld [vmem:[%s2 + $0x8] sm:$0xff]
    %v55 = vld [vmem:[%s2 + $0x10] sm:$0xff]
    %v56 = vld [vmem:[%s2 + $0x18] sm:$0xff]
    %v57 = vld [vmem:[%s3] sm:$0x3]
    %v58 = vld [vmem:[%s4] sm:$0xff]
    %v59 = vld [vmem:[%s4 + $0x8] sm:$0xff]
    %v60 = vld [vmem:[%s4 + $0x10] sm:$0xff]
    %v61 = vld [vmem:[%s4 + $0x18] sm:$0xff]
    %v62 = vld [vmem:[%s5] sm:$0xff]
    %v63 = vld [vmem:[%s5 + $0x8] sm:$0xff]
    %v64 = vld [vmem:[%s5 + $0x10] sm:$0xff]
    %v65 = vld [vmem:[%s5 + $0x18] sm:$0xff]
    %v66 = vld [vmem:[%s1] sm:$0x3]
    loop: start=0, step=1, limit=8
    $region54: #{t_vae_forward.2} parent=1 // loop_pre_header
      _
    $region55: #{t_vae_forward.2} parent=1 // loop_header
      %s68 = sphi 0, %s72
      %p69 = scmp.ge.s32.totalorder %s68, 8
    $region56: #{t_vae_forward.2} parent=1 // loop_header_branch
      %71 = sbr.rel (%p69) target = $region60
    $region57: #{t_vae_forward.2} parent=1 // loop_body
      %s73 = smul.u32 %s68, 2
      %s74 = scalar_lea.vmem %s0, %s73
      %v75 = vld [vmem:[%s74] sm:$0x3]
      %v77 = vlaneseq
      %v78 = vshrl.u32 %v77, 7
      %v79 = vsub.s32 0, %v78
      %v80 = vrot.slane %v57, %v79
      %v81 = vlaneseq
      %v82 = vshrl.u32 %v81, 7
      %v83 = vsub.s32 1, %v82
      %v84 = vrot.slane %v57, %v83
      %vm87 = vcmask 130048
      %v89 = vsel %vm87, %v75, 0
      %91 = vmatprep.subr.mxu0 %v54
      %92 = vmatpush1.msra.mxu0 %v53
      %93 = vmatprep.subr.mxu0 %v56
      %94 = vmatpush1.msra.mxu0 %v55
      %95 = vmatprep.subr.mxu0 0.0
      %96 = vmatpush1.msra.mxu0 0.0
      %97 = vmatprep.subr.mxu0 0.0
      %98 = vmatpush1.msra.mxu0 0.0
      %99 = vmatprep.subr.mxu0 0.0
      %100 = vmatpush1.msra.mxu0 0.0
      %101 = vmatprep.subr.mxu0 0.0
      %102 = vmatpush1.msra.mxu0 0.0
      %103 = vmatprep.subr.mxu0 0.0
      %104 = vmatpush1.msra.mxu0 0.0
      %105 = vmatprep.subr.mxu0 0.0
      %106 = vmatpush1.msra.mxu0 0.0
      %107 = vmatprep.subr.mxu0 0.0
      %108 = vmatpush1.msra.mxu0 0.0
      %109 = vmatprep.subr.mxu0 0.0
      %110 = vmatpush1.msra.mxu0 0.0
      %111 = vmatprep.subr.mxu0 0.0
      %112 = vmatpush1.msra.mxu0 0.0
      %113 = vmatprep.subr.mxu0 0.0
      %114 = vmatpush1.msra.mxu0 0.0
      %115 = vmatprep.subr.mxu0 0.0
      %116 = vmatpush1.msra.mxu0 0.0
      %117 = vmatprep.subr.mxu0 0.0
      %118 = vmatpush1.msra.mxu0 0.0
      %119 = vmatprep.subr.mxu0 0.0
      %120 = vmatpush1.msra.mxu0 0.0
      %121 = vmatprep.subr.mxu0 0.0
      %122 = vmatpush1.msra.mxu0 0.0
      %123 = vmatprep.subr.mxu0 0.0
      %124 = vmatpush1.msra.mxu0 0.0
      %125 = vmatprep.subr.mxu0 0.0
      %126 = vmatpush1.msra.mxu0 0.0
      %127 = vmatprep.subr.mxu0 0.0
      %128 = vmatpush1.msra.mxu0 0.0
      %129 = vmatprep.subr.mxu0 0.0
      %130 = vmatpush1.msra.mxu0 0.0
      %131 = vmatprep.subr.mxu0 0.0
      %132 = vmatpush1.msra.mxu0 0.0
      %133 = vmatprep.subr.mxu0 0.0
      %134 = vmatpush1.msra.mxu0 0.0
      %135 = vmatprep.subr.mxu0 0.0
      %136 = vmatpush1.msra.mxu0 0.0
      %137 = vmatprep.subr.mxu0 0.0
      %138 = vmatpush1.msra.mxu0 0.0
      %139 = vmatprep.subr.mxu0 0.0
      %140 = vmatpush1.msra.mxu0 0.0
      %141 = vmatprep.subr.mxu0 0.0
      %142 = vmatpush1.msra.mxu0 0.0
      %143 = vmatprep.subr.mxu0 0.0
      %144 = vmatpush1.msra.mxu0 0.0
      %145 = vmatprep.subr.mxu0 0.0
      %146 = vmatpush1.msra.mxu0 0.0
      %147 = vmatprep.subr.mxu0 0.0
      %148 = vmatpush1.msra.mxu0 0.0
      %149 = vmatprep.subr.mxu0 0.0
      %150 = vmatpush1.msra.mxu0 0.0
      %151 = vmatprep.subr.mxu0 0.0
      %152 = vmatpush1.msra.mxu0 0.0
      %153 = vmatprep.subr.mxu0 0.0
      %154 = vmatpush1.msra.mxu0 0.0
      %155 = vmatprep.mubr.f32.mxu0 0.0
      %156 = vmatmul.mubr.f32.gmra.mrb[0].mxu0 %v89
      %v157 = vpop.f32.mrb[0].mxu0
      %v158 = vadd.f32 %v80, %v157
      %v159 = vpop.f32.mrb[0].mxu0
      %v160 = vadd.f32 %v84, %v159
      %161 = vdwg.mxu0
      %v164 = vcombine.low %v158, %v160
      %v166 = vunpack.c.l.s4 1983009808
      %v167 = vunpack.c.0.s8 %v166
      %v168 = vlaneseq
      %v169 = vshrl.u32 %v168, 7
      %v170 = vsub.s32 %v167, %v169
      %v171 = vrot.slane %v164, %v170
      %s173 = smul.addr %s73, 2
      %s174 = scalar_lea.vmem [#allocation2], %s173
      %175 = vst [vmem:[%s174] sm:$0xf] %v171
    $region58: #{t_vae_forward.2} parent=1 // loop_footer
      %s72 = sadd.s32 1, %s68
    $region59: #{t_vae_forward.2} parent=1 // loop_footer_branch
      %67 = sbr.rel target = $region55
    $region60: #{t_vae_forward.2} parent=1 // loop_exit
      _
    %v176 = vlaneseq
    %v177 = vand.u32 %v176, 127
    %vm178 = vcmp.ge.s32.totalorder %v177, 64
    %vm179 = vcmp.lt.s32.totalorder %v177, 96
    %vm180 = vmand %vm178, %vm179
    %v181 = vld [vmem:[%s6] sm:$0x3]
    %v182 = vld [vmem:[%s7] sm:$0x3]
    loop: start=0, step=1, limit=8
    $region61: #{t_vae_forward.2} parent=1 // loop_pre_header
      _
    $region62: #{t_vae_forward.2} parent=1 // loop_header
      %s184 = sphi 0, %s188
      %p185 = scmp.ge.s32.totalorder %s184, 8
      %v189 = vphi %v181, %v313
      %v190 = vphi %v182, %v317
    $region63: #{t_vae_forward.2} parent=1 // loop_header_branch
      %187 = sbr.rel (%p185) target = $region67
    $region64: #{t_vae_forward.2} parent=1 // loop_body
      %v191 = vstv %s184
      %vm192 = vcmp.lt.s32.totalorder %v191, %v66
      %s193 = smul.u32 %s184, 2
      %s194 = smul.addr %s193, 2
      %s195 = scalar_lea.vmem [#allocation2], %s194
      %v196 = vld [vmem:[%s195] sm:$0xf]
      %vm197 = vcmask 261120
      %v199 = vsel %vm197, %v189, 0
      %201 = vmatprep.subr.mxu0 0.0
      %202 = vmatpush1.msra.mxu0 %v58
      %203 = vmatprep.subr.mxu0 0.0
      %204 = vmatpush1.msra.mxu0 %v59
      %205 = vmatprep.subr.mxu0 0.0
      %206 = vmatpush1.msra.mxu0 %v60
      %207 = vmatprep.subr.mxu0 0.0
      %208 = vmatpush1.msra.mxu0 %v61
      %209 = vmatprep.subr.mxu0 0.0
      %210 = vmatpush1.msra.mxu0 0.0
      %211 = vmatprep.subr.mxu0 0.0
      %212 = vmatpush1.msra.mxu0 0.0
      %213 = vmatprep.subr.mxu0 0.0
      %214 = vmatpush1.msra.mxu0 0.0
      %215 = vmatprep.subr.mxu0 0.0
      %216 = vmatpush1.msra.mxu0 0.0
      %217 = vmatprep.subr.mxu0 0.0
      %218 = vmatpush1.msra.mxu0 0.0
      %219 = vmatprep.subr.mxu0 0.0
      %220 = vmatpush1.msra.mxu0 0.0
      %221 = vmatprep.subr.mxu0 0.0
      %222 = vmatpush1.msra.mxu0 0.0
      %223 = vmatprep.subr.mxu0 0.0
      %224 = vmatpush1.msra.mxu0 0.0
      %225 = vmatprep.subr.mxu0 0.0
      %226 = vmatpush1.msra.mxu0 0.0
      %227 = vmatprep.subr.mxu0 0.0
      %228 = vmatpush1.msra.mxu0 0.0
      %229 = vmatprep.subr.mxu0 0.0
      %230 = vmatpush1.msra.mxu0 0.0
      %231 = vmatprep.subr.mxu0 0.0
      %232 = vmatpush1.msra.mxu0 0.0
      %233 = vmatprep.subr.mxu0 0.0
      %234 = vmatpush1.msra.mxu0 0.0
      %235 = vmatprep.subr.mxu0 0.0
      %236 = vmatpush1.msra.mxu0 0.0
      %237 = vmatprep.subr.mxu0 0.0
      %238 = vmatpush1.msra.mxu0 0.0
      %239 = vmatprep.subr.mxu0 0.0
      %240 = vmatpush1.msra.mxu0 0.0
      %241 = vmatprep.subr.mxu0 0.0
      %242 = vmatpush1.msra.mxu0 0.0
      %243 = vmatprep.subr.mxu0 0.0
      %244 = vmatpush1.msra.mxu0 0.0
      %245 = vmatprep.subr.mxu0 0.0
      %246 = vmatpush1.msra.mxu0 0.0
      %247 = vmatprep.subr.mxu0 0.0
      %248 = vmatpush1.msra.mxu0 0.0
      %249 = vmatprep.subr.mxu0 0.0
      %250 = vmatpush1.msra.mxu0 0.0
      %251 = vmatprep.subr.mxu0 0.0
      %252 = vmatpush1.msra.mxu0 0.0
      %253 = vmatprep.subr.mxu0 0.0
      %254 = vmatpush1.msra.mxu0 0.0
      %255 = vmatprep.subr.mxu0 0.0
      %256 = vmatpush1.msra.mxu0 0.0
      %257 = vmatprep.subr.mxu0 0.0
      %258 = vmatpush1.msra.mxu0 0.0
      %259 = vmatprep.subr.mxu0 0.0
      %260 = vmatpush1.msra.mxu0 0.0
      %261 = vmatprep.subr.mxu0 0.0
      %262 = vmatpush1.msra.mxu0 0.0
      %263 = vmatprep.subr.mxu0 0.0
      %264 = vmatpush1.msra.mxu0 0.0
      %265 = vmatprep.mubr.f32.mxu0 0.0
      %266 = vmatmul.mubr.f32.gmra.mrb[0].mxu0 %v199
      %v267 = vpop.f32.mrb[0].mxu0
      %v268 = vadd.f32 0.0, %v267
      %v269 = vpop.f32.mrb[0].mxu0
      %270 = vdwg.mxu0
      %v271 = vadd.f32 %v196, %v268
      %v272 = vtanh.pop %v271
      %v273 = vxor.u32 %v271, 2147483648
      %v274 = vmul.f32 %v273, 1.442695
      %v275 = vpow.pop %v274
      %v276 = vadd.f32 %v275, 1.0
      %v277 = vrcp.pop %v276
      %v278 = vmul.f32 1.0, %v277
      %v279 = vsel %vm180, %v272, %v278
      %281 = vrot.lane.b32.xlu0 %v190, 32
      %v282 = vpop.permute.xlu0 %281
      %v284 = vmul.f32 %v279, %v282
      %286 = vrot.lane.b32.xlu0 %v279, 64
      %v287 = vpop.permute.xlu0 %286
      %v289 = vmul.f32 %v279, %v287
      %291 = vrot.lane.b32.xlu0 %v289, 32
      %v292 = vpop.permute.xlu0 %291
      %v294 = vadd.f32 %v284, %v292
      %v295 = vtanh.pop %v294
      %297 = vrot.lane.b32.xlu0 %v295, 64
      %v298 = vpop.permute.xlu0 %297
      %v300 = vmul.f32 %v279, %v298
      %v301 = vsel %vm192, 1, 0
      %302 = vset.pattern.permute.xlu0 0
      %303 = vperm.xlu0 %302, %v301
      %v304 = vpop.permute.xlu0 %303
      %vm305 = vcmp.eq.s32.totalorder %v304, 1
      %306 = vrot.lane.b32.xlu0 %v189, 96
      %v307 = vpop.permute.xlu0 %306
      %v309 = vsel %vm305, %v300, %v307
      %v310 = vsel %vm305, %v294, %v282
      %312 = vrot.lane.b32.xlu0 %v309, 32
      %v313 = vpop.permute.xlu0 %312
      %316 = vrot.lane.b32.xlu0 %v310, 96
      %v317 = vpop.permute.xlu0 %316
    $region65: #{t_vae_forward.2} parent=1 // loop_footer
      %s188 = sadd.s32 1, %s184
    $region66: #{t_vae_forward.2} parent=1 // loop_footer_branch
      %183 = sbr.rel target = $region62
    $region67: #{t_vae_forward.2} parent=1 // loop_exit
      _
    %vm319 = vcmask 254976
    %320 = vst.msk [vmem:[#allocation4] sm:$0x3] %vm319, %v189
    %321 = vst.msk [vmem:[#allocation6] sm:$0x3] %vm319, %v190
    %v322 = vld [vmem:[%s9] sm:$0xff]
    %v323 = vld [vmem:[%s9 + $0x8] sm:$0xff]
    %v324 = vld [vmem:[%s9 + $0x10] sm:$0xff]
    %v325 = vld [vmem:[%s9 + $0x18] sm:$0xff]
    %v326 = vld [vmem:[%s10] sm:$0x1]
    %v328 = vlaneseq
    %v329 = vshrl.u32 %v328, 7
    %v330 = vsub.s32 0, %v329
    %v331 = vrot.slane %v326, %v330
    %vm333 = vcmask 261120
    %v335 = vsel %vm333, %v189, 0
    %337 = vmatprep.subr.mxu0 0.0
    %338 = vmatpush1.msra.mxu0 %v322
    %339 = vmatprep.subr.mxu0 0.0
    %340 = vmatpush1.msra.mxu0 %v323
    %341 = vmatprep.subr.mxu0 0.0
    %342 = vmatpush1.msra.mxu0 %v324
    %343 = vmatprep.subr.mxu0 0.0
    %344 = vmatpush1.msra.mxu0 %v325
    %345 = vmatprep.subr.mxu0 0.0
    %346 = vmatpush1.msra.mxu0 0.0
    %347 = vmatprep.subr.mxu0 0.0
    %348 = vmatpush1.msra.mxu0 0.0
    %349 = vmatprep.subr.mxu0 0.0
    %350 = vmatpush1.msra.mxu0 0.0
    %351 = vmatprep.subr.mxu0 0.0
    %352 = vmatpush1.msra.mxu0 0.0
    %353 = vmatprep.subr.mxu0 0.0
    %354 = vmatpush1.msra.mxu0 0.0
    %355 = vmatprep.subr.mxu0 0.0
    %356 = vmatpush1.msra.mxu0 0.0
    %357 = vmatprep.subr.mxu0 0.0
    %358 = vmatpush1.msra.mxu0 0.0
    %359 = vmatprep.subr.mxu0 0.0
    %360 = vmatpush1.msra.mxu0 0.0
    %361 = vmatprep.subr.mxu0 0.0
    %362 = vmatpush1.msra.mxu0 0.0
    %363 = vmatprep.subr.mxu0 0.0
    %364 = vmatpush1.msra.mxu0 0.0
    %365 = vmatprep.subr.mxu0 0.0
    %366 = vmatpush1.msra.mxu0 0.0
    %367 = vmatprep.subr.mxu0 0.0
    %368 = vmatpush1.msra.mxu0 0.0
    %369 = vmatprep.subr.mxu0 0.0
    %370 = vmatpush1.msra.mxu0 0.0
    %371 = vmatprep.subr.mxu0 0.0
    %372 = vmatpush1.msra.mxu0 0.0
    %373 = vmatprep.subr.mxu0 0.0
    %374 = vmatpush1.msra.mxu0 0.0
    %375 = vmatprep.subr.mxu0 0.0
    %376 = vmatpush1.msra.mxu0 0.0
    %377 = vmatprep.subr.mxu0 0.0
    %378 = vmatpush1.msra.mxu0 0.0
    %379 = vmatprep.subr.mxu0 0.0
    %380 = vmatpush1.msra.mxu0 0.0
    %381 = vmatprep.subr.mxu0 0.0
    %382 = vmatpush1.msra.mxu0 0.0
    %383 = vmatprep.subr.mxu0 0.0
    %384 = vmatpush1.msra.mxu0 0.0
    %385 = vmatprep.subr.mxu0 0.0
    %386 = vmatpush1.msra.mxu0 0.0
    %387 = vmatprep.subr.mxu0 0.0
    %388 = vmatpush1.msra.mxu0 0.0
    %389 = vmatprep.subr.mxu0 0.0
    %390 = vmatpush1.msra.mxu0 0.0
    %391 = vmatprep.subr.mxu0 0.0
    %392 = vmatpush1.msra.mxu0 0.0
    %393 = vmatprep.subr.mxu0 0.0
    %394 = vmatpush1.msra.mxu0 0.0
    %395 = vmatprep.subr.mxu0 0.0
    %396 = vmatpush1.msra.mxu0 0.0
    %397 = vmatprep.subr.mxu0 0.0
    %398 = vmatpush1.msra.mxu0 0.0
    %399 = vmatprep.subr.mxu0 0.0
    %400 = vmatpush1.msra.mxu0 0.0
    %401 = vmatprep.mubr.f32.mxu0 0.0
    %402 = vmatmul.mubr.f32.gmra.mrb[0].mxu0 %v335
    %v403 = vpop.f32.mrb[0].mxu0
    %v404 = vadd.f32 %v331, %v403
    %v405 = vpop.f32.mrb[0].mxu0
    %406 = vdwg.mxu0
    %v407 = vld [vmem:[%s8] sm:$0x3]
    %v408 = vmul.f32 %v404, 0.5
    %v409 = vmul.f32 %v408, 1.442695
    %v410 = vpow.pop %v409
    %412 = vrot.lane.b32.xlu0 %v410, 120
    %v413 = vpop.permute.xlu0 %412
    %v415 = vmul.f32 %v407, %v413
    %v416 = vadd.f32 %v415, %v404
    %v417 = vld [vmem:[%s11] sm:$0xff]
    %v418 = vld [vmem:[%s12] sm:$0x1]
    %v420 = vlaneseq
    %v421 = vshrl.u32 %v420, 7
    %v422 = vsub.s32 0, %v421
    %v423 = vrot.slane %v418, %v422
    %vm425 = vcmask 64512
    %v427 = vsel %vm425, %v416, 0
    %429 = vmatprep.subr.mxu0 0.0
    %430 = vmatpush1.msra.mxu0 %v417
    %431 = vmatprep.subr.mxu0 0.0
    %432 = vmatpush1.msra.mxu0 0.0
    %433 = vmatprep.subr.mxu0 0.0
    %434 = vmatpush1.msra.mxu0 0.0
    %435 = vmatprep.subr.mxu0 0.0
    %436 = vmatpush1.msra.mxu0 0.0
    %437 = vmatprep.subr.mxu0 0.0
    %438 = vmatpush1.msra.mxu0 0.0
    %439 = vmatprep.subr.mxu0 0.0
    %440 = vmatpush1.msra.mxu0 0.0
    %441 = vmatprep.subr.mxu0 0.0
    %442 = vmatpush1.msra.mxu0 0.0
    %443 = vmatprep.subr.mxu0 0.0
    %444 = vmatpush1.msra.mxu0 0.0
    %445 = vmatprep.subr.mxu0 0.0
    %446 = vmatpush1.msra.mxu0 0.0
    %447 = vmatprep.subr.mxu0 0.0
    %448 = vmatpush1.msra.mxu0 0.0
    %449 = vmatprep.subr.mxu0 0.0
    %450 = vmatpush1.msra.mxu0 0.0
    %451 = vmatprep.subr.mxu0 0.0
    %452 = vmatpush1.msra.mxu0 0.0
    %453 = vmatprep.subr.mxu0 0.0
    %454 = vmatpush1.msra.mxu0 0.0
    %455 = vmatprep.subr.mxu0 0.0
    %456 = vmatpush1.msra.mxu0 0.0
    %457 = vmatprep.subr.mxu0 0.0
    %458 = vmatpush1.msra.mxu0 0.0
    %459 = vmatprep.subr.mxu0 0.0
    %460 = vmatpush1.msra.mxu0 0.0
    %461 = vmatprep.subr.mxu0 0.0
    %462 = vmatpush1.msra.mxu0 0.0
    %463 = vmatprep.subr.mxu0 0.0
    %464 = vmatpush1.msra.mxu0 0.0
    %465 = vmatprep.subr.mxu0 0.0
    %466 = vmatpush1.msra.mxu0 0.0
    %467 = vmatprep.subr.mxu0 0.0
    %468 = vmatpush1.msra.mxu0 0.0
    %469 = vmatprep.subr.mxu0 0.0
    %470 = vmatpush1.msra.mxu0 0.0
    %471 = vmatprep.subr.mxu0 0.0
    %472 = vmatpush1.msra.mxu0 0.0
    %473 = vmatprep.subr.mxu0 0.0
    %474 = vmatpush1.msra.mxu0 0.0
    %475 = vmatprep.subr.mxu0 0.0
    %476 = vmatpush1.msra.mxu0 0.0
    %477 = vmatprep.subr.mxu0 0.0
    %478 = vmatpush1.msra.mxu0 0.0
    %479 = vmatprep.subr.mxu0 0.0
    %480 = vmatpush1.msra.mxu0 0.0
    %481 = vmatprep.subr.mxu0 0.0
    %482 = vmatpush1.msra.mxu0 0.0
    %483 = vmatprep.subr.mxu0 0.0
    %484 = vmatpush1.msra.mxu0 0.0
    %485 = vmatprep.subr.mxu0 0.0
    %486 = vmatpush1.msra.mxu0 0.0
    %487 = vmatprep.subr.mxu0 0.0
    %488 = vmatpush1.msra.mxu0 0.0
    %489 = vmatprep.subr.mxu0 0.0
    %490 = vmatpush1.msra.mxu0 0.0
    %491 = vmatprep.subr.mxu0 0.0
    %492 = vmatpush1.msra.mxu0 0.0
    %493 = vmatprep.mubr.f32.mxu0 0.0
    %494 = vmatmul.mubr.f32.gmra.mrb[0].mxu0 %v427
    %v495 = vpop.f32.mrb[0].mxu0
    %v496 = vadd.f32 %v423, %v495
    %v497 = vpop.f32.mrb[0].mxu0
    %498 = vdwg.mxu0
    %vm499 = vcmask 58368
    %500 = vst.msk [vmem:[#allocation8] sm:$0x3] %vm499, %v404
    %502 = vrot.lane.b32.xlu0 %v404, 120
    %v503 = vpop.permute.xlu0 %502
    %505 = vst.msk [vmem:[#allocation9] sm:$0x3] %vm499, %v503
    %506 = vst.msk [vmem:[#allocation11] sm:$0x3] %vm499, %v416
    loop: start=0, step=1, limit=8
    $region68: #{t_vae_forward.2} parent=1 // loop_pre_header
      _
    $region69: #{t_vae_forward.2} parent=1 // loop_header
      %s508 = sphi 0, %s512
      %p509 = scmp.ge.s32.totalorder %s508, 8
      %v513 = vphi %v496, %v646
      %v514 = vphi %v496, %v650
    $region70: #{t_vae_forward.2} parent=1 // loop_header_branch
      %511 = sbr.rel (%p509) target = $region74
    $region71: #{t_vae_forward.2} parent=1 // loop_body
      %v515 = vstv %s508
      %vm516 = vcmp.lt.s32.totalorder %v515, %v66
      %s517 = smul.u32 %s508, 2
      %s518 = smul.addr %s517, 2
      %s519 = scalar_lea.vmem [#allocation2], %s518
      %v520 = vld [vmem:[%s519] sm:$0xf]
      %v522 = vsel %vm333, %v513, 0
      %524 = vmatprep.subr.mxu0 0.0
      %525 = vmatpush1.msra.mxu0 %v62
      %526 = vmatprep.subr.mxu0 0.0
      %527 = vmatpush1.msra.mxu0 %v63
      %528 = vmatprep.subr.mxu0 0.0
      %529 = vmatpush1.msra.mxu0 %v64
      %530 = vmatprep.subr.mxu0 0.0
      %531 = vmatpush1.msra.mxu0 %v65
      %532 = vmatprep.subr.mxu0 0.0
      %533 = vmatpush1.msra.mxu0 0.0
      %534 = vmatprep.subr.mxu0 0.0
      %535 = vmatpush1.msra.mxu0 0.0
      %536 = vmatprep.subr.mxu0 0.0
      %537 = vmatpush1.msra.mxu0 0.0
      %538 = vmatprep.subr.mxu0 0.0
      %539 = vmatpush1.msra.mxu0 0.0
      %540 = vmatprep.subr.mxu0 0.0
      %541 = vmatpush1.msra.mxu0 0.0
      %542 = vmatprep.subr.mxu0 0.0
      %543 = vmatpush1.msra.mxu0 0.0
      %544 = vmatprep.subr.mxu0 0.0
      %545 = vmatpush1.msra.mxu0 0.0
      %546 = vmatprep.subr.mxu0 0.0
      %547 = vmatpush1.msra.mxu0 0.0
      %548 = vmatprep.subr.mxu0 0.0
      %549 = vmatpush1.msra.mxu0 0.0
      %550 = vmatprep.subr.mxu0 0.0
      %551 = vmatpush1.msra.mxu0 0.0
      %552 = vmatprep.subr.mxu0 0.0
      %553 = vmatpush1.msra.mxu0 0.0
      %554 = vmatprep.subr.mxu0 0.0
      %555 = vmatpush1.msra.mxu0 0.0
      %556 = vmatprep.subr.mxu0 0.0
      %557 = vmatpush1.msra.mxu0 0.0
      %558 = vmatprep.subr.mxu0 0.0
      %559 = vmatpush1.msra.mxu0 0.0
      %560 = vmatprep.subr.mxu0 0.0
      %561 = vmatpush1.msra.mxu0 0.0
      %562 = vmatprep.subr.mxu0 0.0
      %563 = vmatpush1.msra.mxu0 0.0
      %564 = vmatprep.subr.mxu0 0.0
      %565 = vmatpush1.msra.mxu0 0.0
      %566 = vmatprep.subr.mxu0 0.0
      %567 = vmatpush1.msra.mxu0 0.0
      %568 = vmatprep.subr.mxu0 0.0
      %569 = vmatpush1.msra.mxu0 0.0
      %570 = vmatprep.subr.mxu0 0.0
      %571 = vmatpush1.msra.mxu0 0.0
      %572 = vmatprep.subr.mxu0 0.0
      %573 = vmatpush1.msra.mxu0 0.0
      %574 = vmatprep.subr.mxu0 0.0
      %575 = vmatpush1.msra.mxu0 0.0
      %576 = vmatprep.subr.mxu0 0.0
      %577 = vmatpush1.msra.mxu0 0.0
      %578 = vmatprep.subr.mxu0 0.0
      %579 = vmatpush1.msra.mxu0 0.0
      %580 = vmatprep.subr.mxu0 0.0
      %581 = vmatpush1.msra.mxu0 0.0
      %582 = vmatprep.subr.mxu0 0.0
      %583 = vmatpush1.msra.mxu0 0.0
      %584 = vmatprep.subr.mxu0 0.0
      %585 = vmatpush1.msra.mxu0 0.0
      %586 = vmatprep.subr.mxu0 0.0
      %587 = vmatpush1.msra.mxu0 0.0
      %588 = vmatprep.mubr.f32.mxu0 0.0
      %589 = vmatmul.mubr.f32.gmra.mrb[0].mxu0 %v522
      %v590 = vpop.f32.mrb[0].mxu0
      %v591 = vadd.f32 0.0, %v590
      %v592 = vpop.f32.mrb[0].mxu0
      %593 = vdwg.mxu0
      %v595 = vrot.slane %v520, 2
      %v597 = vadd.f32 %v595, %v591
      %v598 = vtanh.pop %v597
      %v599 = vxor.u32 %v597, 2147483648
      %v600 = vmul.f32 %v599, 1.442695
      %v601 = vpow.pop %v600
      %v602 = vadd.f32 %v601, 1.0
      %v603 = vrcp.pop %v602
      %v604 = vmul.f32 1.0, %v603
      %v605 = vsel %vm180, %v598, %v604
      %607 = vrot.lane.b32.xlu0 %v514, 32
      %v608 = vpop.permute.xlu0 %607
      %v610 = vmul.f32 %v605, %v608
      %612 = vrot.lane.b32.xlu0 %v605, 64
      %v613 = vpop.permute.xlu0 %612
      %v615 = vmul.f32 %v605, %v613
      %617 = vrot.lane.b32.xlu0 %v615, 32
      %v618 = vpop.permute.xlu0 %617
      %v620 = vadd.f32 %v610, %v618
      %v621 = vtanh.pop %v620
      %623 = vrot.lane.b32.xlu0 %v621, 64
      %v624 = vpop.permute.xlu0 %623
      %v626 = vmul.f32 %v605, %v624
      %v627 = vsel %vm516, 1, 0
      %628 = vset.pattern.permute.xlu0 0
      %629 = vperm.xlu0 %628, %v627
      %v630 = vpop.permute.xlu0 %629
      %vm631 = vcmp.eq.s32.totalorder %v630, 1
      %632 = vrot.lane.b32.xlu0 %v513, 96
      %v633 = vpop.permute.xlu0 %632
      %v635 = vsel %vm631, %v626, %v633
      %v636 = vsel %vm631, %v620, %v608
      %v637 = vsel %vm631, %v626, 0.0
      %639 = vrot.lane.b32.xlu0 %v637, 32
      %v640 = vpop.permute.xlu0 %639
      %s642 = scalar_lea.vmem [#allocation3], %s517
      %643 = vst.msk [vmem:[%s642] sm:$0x3] %vm319, %v640
      %645 = vrot.lane.b32.xlu0 %v635, 32
      %v646 = vpop.permute.xlu0 %645
      %649 = vrot.lane.b32.xlu0 %v636, 96
      %v650 = vpop.permute.xlu0 %649
    $region72: #{t_vae_forward.2} parent=1 // loop_footer
      %s512 = sadd.s32 1, %s508
    $region73: #{t_vae_forward.2} parent=1 // loop_footer_branch
      %507 = sbr.rel target = $region69
    $region74: #{t_vae_forward.2} parent=1 // loop_exit
      _
    %v652 = vld [vmem:[#allocation3] sm:$0x1]
    %v653 = vld [vmem:[#allocation3 + $0x2] sm:$0x1]
    %v654 = vld [vmem:[#allocation3 + $0x4] sm:$0x1]
    %v655 = vld [vmem:[#allocation3 + $0x6] sm:$0x1]
    %v656 = vld [vmem:[#allocation3 + $0x8] sm:$0x1]
    %v657 = vld [vmem:[#allocation3 + $0xa] sm:$0x1]
    %v658 = vld [vmem:[#allocation3 + $0xc] sm:$0x1]
    %v659 = vld [vmem:[#allocation3 + $0xe] sm:$0x1]
    %v668 = vrot.slane %v653, 7
    %vm669 = vcmask 1041409
    %v670 = vsel %vm669, %v668, %v652
    %v671 = vrot.slane %v654, 6
    %vm672 = vcmask 1042434
    %v673 = vsel %vm672, %v671, %v670
    %v674 = vrot.slane %v655, 5
    %vm675 = vcmask 1043459
    %v676 = vsel %vm675, %v674, %v673
    %v677 = vrot.slane %v656, 4
    %vm678 = vcmask 1044484
    %v679 = vsel %vm678, %v677, %v676
    %v680 = vrot.slane %v657, 3
    %vm681 = vcmask 1045509
    %v682 = vsel %vm681, %v680, %v679
    %v683 = vrot.slane %v658, 2
    %vm684 = vcmask 1046534
    %v685 = vsel %vm684, %v683, %v682
    %v686 = vrot.slane %v659, 1
    %vm687 = vcmask 1047559
    %v688 = vsel %vm687, %v686, %v685
    %690 = vst.msk [vmem:[%s13] sm:$0xff] %vm333, %v688
    %v691 = vld [vmem:[#allocation3 + $0x1] sm:$0x1]
    %v692 = vld [vmem:[#allocation3 + $0x3] sm:$0x1]
    %v693 = vld [vmem:[#allocation3 + $0x5] sm:$0x1]
    %v694 = vld [vmem:[#allocation3 + $0x7] sm:$0x1]
    %v695 = vld [vmem:[#allocation3 + $0x9] sm:$0x1]
    %v696 = vld [vmem:[#allocation3 + $0xb] sm:$0x1]
    %v697 = vld [vmem:[#allocation3 + $0xd] sm:$0x1]
    %v698 = vld [vmem:[#allocation3 + $0xf] sm:$0x1]
    %v707 = vrot.slane %v692, 7
    %v708 = vsel %vm669, %v707, %v691
    %v709 = vrot.slane %v693, 6
    %v710 = vsel %vm672, %v709, %v708
    %v711 = vrot.slane %v694, 5
    %v712 = vsel %vm675, %v711, %v710
    %v713 = vrot.slane %v695, 4
    %v714 = vsel %vm678, %v713, %v712
    %v715 = vrot.slane %v696, 3
    %v716 = vsel %vm681, %v715, %v714
    %v717 = vrot.slane %v697, 2
    %v718 = vsel %vm684, %v717, %v716
    %v719 = vrot.slane %v698, 1
    %v720 = vsel %vm687, %v719, %v718
    %s722 = scalar_lea.vmem %s13, 8
    %723 = vst.msk [vmem:[%s722] sm:$0xff] %vm333, %v720
    // Predicated region
    $region75: #{t_vae_forward.2} parent=1 // pred_check
      _
    $region76: #{t_vae_forward.2} parent=1 // pred_check_branch
      %725 = sbr.rel (0) target = $region78
    $region77: #{t_vae_forward.2} parent=1 // pred_region
      _
    $region78: #{t_vae_forward.2} parent=1 // pred_fallthru
      _
    // Predicated region
    $region79: #{t_vae_forward.2} parent=1 // pred_check
      _
    $region80: #{t_vae_forward.2} parent=1 // pred_check_branch
      %727 = sbr.rel (0) target = $region82
    $region81: #{t_vae_forward.2} parent=1 // pred_region
      %s729 = ssub.s32 32, 32
      %730 = vsyncadd [#allocation5], %s729
      %s732 = sshll.u32 [#allocation4], 4
      %s733 = int_to_ptr.vmem [resolvable:$true] %s732
      %735 = dma.vmem_to_hbm [thread:$0]  %s733, 32, %s14, [#allocation5]
    $region82: #{t_vae_forward.2} parent=1 // pred_fallthru
      _
    // Predicated region
    $region83: #{t_vae_forward.2} parent=1 // pred_check
      _
    $region84: #{t_vae_forward.2} parent=1 // pred_check_branch
      %737 = sbr.rel (0) target = $region86
    $region85: #{t_vae_forward.2} parent=1 // pred_region
      %s739 = ssub.s32 32, 32
      %740 = vsyncadd [#allocation7], %s739
      %s742 = sshll.u32 [#allocation6], 4
      %s743 = int_to_ptr.vmem [resolvable:$true] %s742
      %745 = dma.vmem_to_hbm [thread:$0]  %s743, 32, %s15, [#allocation7]
    $region86: #{t_vae_forward.2} parent=1 // pred_fallthru
      _
    // Predicated region
    $region87: #{t_vae_forward.2} parent=1 // pred_check
      _
    $region88: #{t_vae_forward.2} parent=1 // pred_check_branch
      %747 = sbr.rel (0) target = $region90
    $region89: #{t_vae_forward.2} parent=1 // pred_region
      %s749 = ssub.s32 32, 32
      %750 = vsyncadd [#allocation7], %s749
      %s752 = sshll.u32 [#allocation8], 4
      %s753 = int_to_ptr.vmem [resolvable:$true] %s752
      %755 = dma.vmem_to_hbm [thread:$0]  %s753, 32, %s16, [#allocation7]
    $region90: #{t_vae_forward.2} parent=1 // pred_fallthru
      _
    // Predicated region
    $region91: #{t_vae_forward.2} parent=1 // pred_check
      _
    $region92: #{t_vae_forward.2} parent=1 // pred_check_branch
      %757 = sbr.rel (0) target = $region94
    $region93: #{t_vae_forward.2} parent=1 // pred_region
      %s759 = ssub.s32 32, 32
      %760 = vsyncadd [#allocation10], %s759
      %s762 = sshll.u32 [#allocation9], 4
      %s763 = int_to_ptr.vmem [resolvable:$true] %s762
      %765 = dma.vmem_to_hbm [thread:$0]  %s763, 32, %s17, [#allocation10]
    $region94: #{t_vae_forward.2} parent=1 // pred_fallthru
      _
    // Predicated region
    $region95: #{t_vae_forward.2} parent=1 // pred_check
      _
    $region96: #{t_vae_forward.2} parent=1 // pred_check_branch
      %767 = sbr.rel (0) target = $region98
    $region97: #{t_vae_forward.2} parent=1 // pred_region
      %s769 = ssub.s32 32, 32
      %770 = vsyncadd [#allocation10], %s769
      %s772 = sshll.u32 [#allocation11], 4
      %s773 = int_to_ptr.vmem [resolvable:$true] %s772
      %775 = dma.vmem_to_hbm [thread:$0]  %s773, 32, %s18, [#allocation10]
    $region98: #{t_vae_forward.2} parent=1 // pred_fallthru
      _
    // Predicated region
    $region99: #{t_vae_forward.2} parent=1 // pred_check
      _
    $region100: #{t_vae_forward.2} parent=1 // pred_check_branch
      %777 = sbr.rel (0) target = $region102
    $region101: #{t_vae_forward.2} parent=1 // pred_region
      _
    $region102: #{t_vae_forward.2} parent=1 // pred_fallthru
      _
    // Predicated region
    $region103: #{t_vae_forward.2} parent=1 // pred_check
      _
    $region104: #{t_vae_forward.2} parent=1 // pred_check_branch
      %779 = sbr.rel (0) target = $region106
    $region105: #{t_vae_forward.2} parent=1 // pred_region
      %780 = dma.done [#allocation5], 32
    $region106: #{t_vae_forward.2} parent=1 // pred_fallthru
      _
    // Predicated region
    $region107: #{t_vae_forward.2} parent=1 // pred_check
      _
    $region108: #{t_vae_forward.2} parent=1 // pred_check_branch
      %782 = sbr.rel (0) target = $region110
    $region109: #{t_vae_forward.2} parent=1 // pred_region
      %783 = dma.done [#allocation7], 32
    $region110: #{t_vae_forward.2} parent=1 // pred_fallthru
      _
    // Predicated region
    $region111: #{t_vae_forward.2} parent=1 // pred_check
      _
    $region112: #{t_vae_forward.2} parent=1 // pred_check_branch
      %785 = sbr.rel (0) target = $region114
    $region113: #{t_vae_forward.2} parent=1 // pred_region
      %786 = dma.done [#allocation7], 32
    $region114: #{t_vae_forward.2} parent=1 // pred_fallthru
      _
    // Predicated region
    $region115: #{t_vae_forward.2} parent=1 // pred_check
      _
    $region116: #{t_vae_forward.2} parent=1 // pred_check_branch
      %788 = sbr.rel (0) target = $region118
    $region117: #{t_vae_forward.2} parent=1 // pred_region
      %789 = dma.done [#allocation10], 32
    $region118: #{t_vae_forward.2} parent=1 // pred_fallthru
      _
    // Predicated region
    $region119: #{t_vae_forward.2} parent=1 // pred_check
      _
    $region120: #{t_vae_forward.2} parent=1 // pred_check_branch
      %791 = sbr.rel (0) target = $region122
    $region121: #{t_vae_forward.2} parent=1 // pred_region
      %792 = dma.done [#allocation10], 32
    $region122: #{t_vae_forward.2} parent=1 // pred_fallthru
      _
    %793 = vsyncpa [#allocation5], 1
    %794 = vsyncpa [#allocation7], 1
    %795 = vsyncpa [#allocation10], 1

</llo_original>
